<compile_context>
chip_gen: v7x
topology: tpu7x:2x2x1
jax: 0.10.0
libtpu: 0.0.40
codegen_flags: <defaults>
</compile_context>

<pallas_src>
import numpy as np
import jax
import jax.numpy as jnp
from jax.experimental import pallas as pl
from jax.experimental.pallas import tpu as pltpu

D_FEATURE = 32      # d_feature is data-dependent in the original script; pick small
H1, H2, OUT = 1024, 512, 1


def _round_up(x, m):
    return ((x + m - 1) // m) * m


def mlp_kernel(x_ref, w1_ref, b1_ref, w2_ref, b2_ref, w3_ref, b3_ref, o_ref):
    # hidden1 + (drop1: identity in eval) + relu1   -- bf16 inputs, f32 MXU accum
    h1 = jnp.dot(x_ref[...], w1_ref[...], preferred_element_type=jnp.float32)
    h1 = jnp.maximum(h1 + b1_ref[...], 0.0)
    # hidden2 + (drop2: identity in eval) + relu2
    h2 = jnp.dot(h1.astype(jnp.bfloat16), w2_ref[...],
                 preferred_element_type=jnp.float32)
    h2 = jnp.maximum(h2 + b2_ref[...], 0.0)
    # out layer (512 -> 1): VPU multiply + lane reduction instead of an N=1 MXU matmul
    o = jnp.sum(h2 * w3_ref[...], axis=-1, keepdims=True) + b3_ref[...]
    o_ref[...] = o.astype(o_ref.dtype)


def net_forward(x, params, *, tb=256):
    """x: [B, D_FEATURE] f32. params: (w1,b1,w2,b2,w3,b3) f32, weights stored [in,out]."""
    w1, b1, w2, b2, w3, b3 = params
    B, D = x.shape

    # Tile/padding geometry.
    tb_eff = min(tb, max(8, _round_up(B, 8)))       # don't over-pad tiny batches
    b_pad = _round_up(B, tb_eff)
    d_pad = _round_up(D, 128)

    # bf16 weights / inputs (f32 accumulation inside the kernel). Pad K -> 128.
    x_p = jnp.zeros((b_pad, d_pad), jnp.bfloat16).at[:B, :D].set(
        x.astype(jnp.bfloat16))
    w1_p = jnp.zeros((d_pad, H1), jnp.bfloat16).at[:D, :].set(
        w1.astype(jnp.bfloat16))
    w2_b = w2.astype(jnp.bfloat16)                   # [H1, H2]
    w3_row = w3.reshape(1, H2).astype(jnp.float32)   # row form for the VPU reduction
    b1_r = b1.reshape(1, H1).astype(jnp.float32)
    b2_r = b2.reshape(1, H2).astype(jnp.float32)
    b3_r = b3.reshape(1, OUT).astype(jnp.float32)

    grid = (b_pad // tb_eff,)

    const = lambda i: (0, 0)   # weights/biases resident in VMEM across grid steps
    flops = 2 * b_pad * (d_pad * H1 + H1 * H2 + H2)
    bytes_accessed = (x_p.size * 2 + w1_p.size * 2 + w2_b.size * 2
                      + b1_r.size * 4 + b2_r.size * 4 + w3_row.size * 4
                      + b3_r.size * 4 + b_pad * OUT * 4)

    out = pl.pallas_call(
        mlp_kernel,
        out_shape=jax.ShapeDtypeStruct((b_pad, OUT), jnp.float32),
        grid=grid,
        in_specs=[
            pl.BlockSpec((tb_eff, d_pad), lambda i: (i, 0)),   # x tile
            pl.BlockSpec((d_pad, H1), const),                  # w1 (resident)
            pl.BlockSpec((1, H1), const),                      # b1
            pl.BlockSpec((H1, H2), const),                     # w2 (resident)
            pl.BlockSpec((1, H2), const),                      # b2
            pl.BlockSpec((1, H2), const),                      # w3 row
            pl.BlockSpec((1, OUT), const),                     # b3
        ],
        out_specs=pl.BlockSpec((tb_eff, OUT), lambda i: (i, 0)),
        compiler_params=pltpu.CompilerParams(
            dimension_semantics=("parallel",)),
        cost_estimate=pl.CostEstimate(
            flops=flops, transcendentals=0, bytes_accessed=bytes_accessed),
    )(x_p, w1_p, b1_r, w2_b, b2_r, w3_row, b3_r)

    return out[:B]


def xavier_uniform(key, fan_in, fan_out, gain):
    # matches torch.nn.init.xavier_uniform_ semantics; returned as [in, out]
    bound = gain * np.sqrt(6.0 / (fan_in + fan_out))
    return jax.random.uniform(key, (fan_in, fan_out), jnp.float32, -bound, bound)


def init_params(key):
    k1, k2, k3, k4, k5, k6 = jax.random.split(key, 6)
    gain = np.sqrt(2.0)
    w1 = xavier_uniform(k1, D_FEATURE, H1, gain)
    w2 = xavier_uniform(k2, H1, H2, gain)
    # nn.Linear default init for out layer and all biases: U(-1/sqrt(fan_in), ..)
    w3 = jax.random.uniform(k3, (H2, OUT), jnp.float32,
                            -1.0 / np.sqrt(H2), 1.0 / np.sqrt(H2))
    b1 = jax.random.uniform(k4, (1, H1), jnp.float32,
                            -1.0 / np.sqrt(D_FEATURE), 1.0 / np.sqrt(D_FEATURE))
    b2 = jax.random.uniform(k5, (1, H2), jnp.float32,
                            -1.0 / np.sqrt(H1), 1.0 / np.sqrt(H1))
    b3 = jax.random.uniform(k6, (1, OUT), jnp.float32,
                            -1.0 / np.sqrt(H2), 1.0 / np.sqrt(H2))
    return w1, b1, w2, b2, w3, b3


if __name__ == "__main__":
    key = jax.random.PRNGKey(0)
    kx, kp = jax.random.split(key)
    B = 8
    x = jax.random.normal(kx, (B, D_FEATURE), jnp.float32)
    params = init_params(kp)

    out = jax.jit(net_forward)(x, params)
    jax.block_until_ready(out)

    # pure-JAX reference with the same bf16 precision policy as the kernel
    w1, b1, w2, b2, w3, b3 = params
    xb = x.astype(jnp.bfloat16).astype(jnp.float32)
    w1b = w1.astype(jnp.bfloat16).astype(jnp.float32)
    w2b = w2.astype(jnp.bfloat16).astype(jnp.float32)
    h1 = jnp.maximum(xb @ w1b + b1, 0.0)
    h1b = h1.astype(jnp.bfloat16).astype(jnp.float32)
    h2 = jnp.maximum(h1b @ w2b + b2, 0.0)
    ref = jnp.sum(h2 * w3.reshape(1, H2), axis=-1, keepdims=True) + b3

    np.testing.assert_allclose(np.asarray(out), np.asarray(ref), rtol=2e-2, atol=2e-2)
    assert out.shape == (B, 1)
    print("KERNEL_OK")
</pallas_src>

<mosaic_0001>
module attributes {stable_mosaic.version = 11 : i64} {
  func.func @mlp_kernel(%arg0: i32, %arg1: memref<8x128xbf16, #tpu.memory_space<vmem>>, %arg2: memref<128x1024xbf16, #tpu.memory_space<vmem>>, %arg3: memref<1x1024xf32, #tpu.memory_space<vmem>>, %arg4: memref<1024x512xbf16, #tpu.memory_space<vmem>>, %arg5: memref<1x512xf32, #tpu.memory_space<vmem>>, %arg6: memref<1x512xf32, #tpu.memory_space<vmem>>, %arg7: memref<1x1xf32, #tpu.memory_space<vmem>>, %arg8: memref<8x1xf32, #tpu.memory_space<vmem>>) attributes {dimension_semantics = [#tpu.dimension_semantics<parallel>], iteration_bounds = array<i64: 1>, scalar_prefetch = 0 : i64, scratch_operands = 0 : i64, tpu.core_type = #tpu.core_type<tc>, window_params = [{transform_indices = @transform_0, window_bounds = array<i64: 8, 128>}, {pipeline_mode = #tpu.pipeline_mode<synchronous>, transform_indices = @transform_1, window_bounds = array<i64: 128, 1024>}, {pipeline_mode = #tpu.pipeline_mode<synchronous>, transform_indices = @transform_2, window_bounds = array<i64: 1, 1024>}, {pipeline_mode = #tpu.pipeline_mode<synchronous>, transform_indices = @transform_3, window_bounds = array<i64: 1024, 512>}, {pipeline_mode = #tpu.pipeline_mode<synchronous>, transform_indices = @transform_4, window_bounds = array<i64: 1, 512>}, {pipeline_mode = #tpu.pipeline_mode<synchronous>, transform_indices = @transform_5, window_bounds = array<i64: 1, 512>}, {pipeline_mode = #tpu.pipeline_mode<synchronous>, transform_indices = @transform_6, window_bounds = array<i64: 1, 1>}, {transform_indices = @transform_7, window_bounds = array<i64: 8, 1>}]} {
    %c0 = arith.constant 0 : index
    %c0_0 = arith.constant 0 : index
    %0 = vector.load %arg1[%c0, %c0_0] : memref<8x128xbf16, #tpu.memory_space<vmem>>, vector<8x128xbf16>
    %c0_1 = arith.constant 0 : index
    %c0_2 = arith.constant 0 : index
    %1 = vector.load %arg2[%c0_1, %c0_2] : memref<128x1024xbf16, #tpu.memory_space<vmem>>, vector<128x1024xbf16>
    %cst = arith.constant dense<0.000000e+00> : vector<8x1024xf32>
    %2 = tpu.matmul %0, %1, %cst {dimension_numbers = #tpu.dot_dimension_numbers<[1], [0], [0], [1], [0, 0, 1, 1], [], []>} : vector<8x128xbf16>, vector<128x1024xbf16>, vector<8x1024xf32> -> vector<8x1024xf32>
    %c0_3 = arith.constant 0 : index
    %c0_4 = arith.constant 0 : index
    %3 = vector.load %arg3[%c0_3, %c0_4] : memref<1x1024xf32, #tpu.memory_space<vmem>>, vector<1x1024xf32>
    %4 = vector.broadcast %3 : vector<1x1024xf32> to vector<8x1024xf32>
    %5 = arith.addf %2, %4 : vector<8x1024xf32>
    %cst_5 = arith.constant 0.000000e+00 : f32
    %6 = vector.broadcast %cst_5 : f32 to vector<8x1024xf32>
    %7 = arith.maximumf %5, %6 : vector<8x1024xf32>
    %8 = arith.truncf %7 : vector<8x1024xf32> to vector<8x1024xbf16>
    %c0_6 = arith.constant 0 : index
    %c0_7 = arith.constant 0 : index
    %9 = vector.load %arg4[%c0_6, %c0_7] : memref<1024x512xbf16, #tpu.memory_space<vmem>>, vector<1024x512xbf16>
    %cst_8 = arith.constant dense<0.000000e+00> : vector<8x512xf32>
    %10 = tpu.matmul %8, %9, %cst_8 {dimension_numbers = #tpu.dot_dimension_numbers<[1], [0], [0], [1], [0, 0, 1, 1], [], []>} : vector<8x1024xbf16>, vector<1024x512xbf16>, vector<8x512xf32> -> vector<8x512xf32>
    %c0_9 = arith.constant 0 : index
    %c0_10 = arith.constant 0 : index
    %11 = vector.load %arg5[%c0_9, %c0_10] : memref<1x512xf32, #tpu.memory_space<vmem>>, vector<1x512xf32>
    %12 = vector.broadcast %11 : vector<1x512xf32> to vector<8x512xf32>
    %13 = arith.addf %10, %12 : vector<8x512xf32>
    %cst_11 = arith.constant 0.000000e+00 : f32
    %14 = vector.broadcast %cst_11 : f32 to vector<8x512xf32>
    %15 = arith.maximumf %13, %14 : vector<8x512xf32>
    %c0_12 = arith.constant 0 : index
    %c0_13 = arith.constant 0 : index
    %16 = vector.load %arg6[%c0_12, %c0_13] : memref<1x512xf32, #tpu.memory_space<vmem>>, vector<1x512xf32>
    %17 = vector.broadcast %16 : vector<1x512xf32> to vector<8x512xf32>
    %18 = arith.mulf %15, %17 : vector<8x512xf32>
    %cst_14 = arith.constant dense<0.000000e+00> : vector<8xf32>
    %19 = vector.multi_reduction <add>, %18, %cst_14 [1] : vector<8x512xf32> to vector<8xf32>
    %20 = vector.shape_cast %19 : vector<8xf32> to vector<8x1xf32>
    %c0_15 = arith.constant 0 : index
    %c0_16 = arith.constant 0 : index
    %21 = vector.load %arg7[%c0_15, %c0_16] : memref<1x1xf32, #tpu.memory_space<vmem>>, vector<1x1xf32>
    %22 = vector.broadcast %21 : vector<1x1xf32> to vector<8x1xf32>
    %23 = arith.addf %20, %22 : vector<8x1xf32>
    %c0_17 = arith.constant 0 : index
    %c0_18 = arith.constant 0 : index
    %24 = vector.load %arg8[%c0_17, %c0_18] : memref<8x1xf32, #tpu.memory_space<vmem>>, vector<8x1xf32>
    tpu.vector_store %arg8[%c0_17, %c0_18], %23 {strides = array<i32>} : memref<8x1xf32, #tpu.memory_space<vmem>>, vector<8x1xf32>,
    return
  }
  func.func @transform_0(%arg0: i32) -> (i32, i32) {
    %c0_i32 = arith.constant 0 : i32
    %c0_i32_0 = arith.constant 0 : i32
    return %arg0, %c0_i32 : i32, i32
  }
  func.func @transform_1(%arg0: i32) -> (i32, i32) {
    %c0_i32 = arith.constant 0 : i32
    %c0_i32_0 = arith.constant 0 : i32
    %c0_i32_1 = arith.constant 0 : i32
    return %c0_i32, %c0_i32_0 : i32, i32
  }
  func.func @transform_2(%arg0: i32) -> (i32, i32) {
    %c0_i32 = arith.constant 0 : i32
    %c0_i32_0 = arith.constant 0 : i32
    %c0_i32_1 = arith.constant 0 : i32
    return %c0_i32, %c0_i32_0 : i32, i32
  }
  func.func @transform_3(%arg0: i32) -> (i32, i32) {
    %c0_i32 = arith.constant 0 : i32
    %c0_i32_0 = arith.constant 0 : i32
    %c0_i32_1 = arith.constant 0 : i32
    return %c0_i32, %c0_i32_0 : i32, i32
  }
  func.func @transform_4(%arg0: i32) -> (i32, i32) {
    %c0_i32 = arith.constant 0 : i32
    %c0_i32_0 = arith.constant 0 : i32
    %c0_i32_1 = arith.constant 0 : i32
    return %c0_i32, %c0_i32_0 : i32, i32
  }
  func.func @transform_5(%arg0: i32) -> (i32, i32) {
    %c0_i32 = arith.constant 0 : i32
    %c0_i32_0 = arith.constant 0 : i32
    %c0_i32_1 = arith.constant 0 : i32
    return %c0_i32, %c0_i32_0 : i32, i32
  }
  func.func @transform_6(%arg0: i32) -> (i32, i32) {
    %c0_i32 = arith.constant 0 : i32
    %c0_i32_0 = arith.constant 0 : i32
    %c0_i32_1 = arith.constant 0 : i32
    return %c0_i32, %c0_i32_0 : i32, i32
  }
  func.func @transform_7(%arg0: i32) -> (i32, i32) {
    %c0_i32 = arith.constant 0 : i32
    %c0_i32_0 = arith.constant 0 : i32
    return %arg0, %c0_i32 : i32, i32
  }
}

</mosaic_0001>

<llo_original>
// kernel: net_forward.1
$region0: #{net_forward.1}
  #allocation0 [shape = 'u32[]', space=smem, size = 0x4, offset = 0x4, fixed_abs, tag = 'smem constant byte address 0x4 - core index']
  #allocation1 [shape = 'u32[144,128]{1,0:T(1,128)}', space=vmem, size = 0x12000, scoped, tag = 'internal scratch']
  #allocation2 [shape = 'f32[1,1]{1,0:T(1,128)S(1)}', space=vmem, size = 0x200, scoped, tag = 'scoped memory for net_forward.1']
  %s0 = inlined_call_operand.vmem [shape: bf16[8,128], index: 0, kind: input, shape index: {}]
  %s1 = inlined_call_operand.vmem [shape: bf16[128,1024], index: 1, kind: input, shape index: {}]
  %s2 = inlined_call_operand.vmem [shape: f32[1,1024], index: 2, kind: input, shape index: {}]
  %s3 = inlined_call_operand.vmem [shape: bf16[1024,512], index: 3, kind: input, shape index: {}]
  %s4 = inlined_call_operand.vmem [shape: f32[1,512], index: 4, kind: input, shape index: {}]
  %s5 = inlined_call_operand.vmem [shape: f32[1,512], index: 5, kind: input, shape index: {}]
  %s6 = inlined_call_operand.<no memory space> [shape: f32[1,1], index: 6, kind: input, shape index: {}]
  %s7 = inlined_call_operand.vmem [shape: f32[8,1], index: 7, kind: output, shape index: {}]
  %s8 = sld [smem:[#allocation0]]
  $region38: #{net_forward.1} parent=0
    _
  %s10 = ssub.s32 1, %s8
  %s11 = scalar_select 0, %s10, %s8
  %v12 = vstv %s6
  %13 = vst [vmem:[#allocation2] sm:$0x1] %v12
  // Predicated region
  $region2: #{net_forward.1} parent=0 // pred_check
    _
  $region3: #{net_forward.1} parent=0 // pred_check_branch
    %15 = sbr.rel (0) target = $region5
  $region4: #{net_forward.1} parent=0 // pred_region
    _
  $region5: #{net_forward.1} parent=0 // pred_fallthru
    _
  // Predicated region
  $region6: #{net_forward.1} parent=0 // pred_check
    _
  $region7: #{net_forward.1} parent=0 // pred_check_branch
    %17 = sbr.rel (0) target = $region9
  $region8: #{net_forward.1} parent=0 // pred_region
    _
  $region9: #{net_forward.1} parent=0 // pred_fallthru
    _
  // Predicated region
  $region10: #{net_forward.1} parent=0 // pred_check
    _
  $region11: #{net_forward.1} parent=0 // pred_check_branch
    %19 = sbr.rel (0) target = $region13
  $region12: #{net_forward.1} parent=0 // pred_region
    _
  $region13: #{net_forward.1} parent=0 // pred_fallthru
    _
  // Predicated region
  $region14: #{net_forward.1} parent=0 // pred_check
    _
  $region15: #{net_forward.1} parent=0 // pred_check_branch
    %21 = sbr.rel (0) target = $region17
  $region16: #{net_forward.1} parent=0 // pred_region
    _
  $region17: #{net_forward.1} parent=0 // pred_fallthru
    _
  // Predicated region
  $region18: #{net_forward.1} parent=0 // pred_check
    _
  $region19: #{net_forward.1} parent=0 // pred_check_branch
    %23 = sbr.rel (0) target = $region21
  $region20: #{net_forward.1} parent=0 // pred_region
    _
  $region21: #{net_forward.1} parent=0 // pred_fallthru
    _
  // Predicated region
  $region22: #{net_forward.1} parent=0 // pred_check
    _
  $region23: #{net_forward.1} parent=0 // pred_check_branch
    %25 = sbr.rel (0) target = $region25
  $region24: #{net_forward.1} parent=0 // pred_region
    _
  $region25: #{net_forward.1} parent=0 // pred_fallthru
    _
  // Predicated region
  $region26: #{net_forward.1} parent=0 // pred_check
    _
  $region27: #{net_forward.1} parent=0 // pred_check_branch
    %27 = sbr.rel (0) target = $region29
  $region28: #{net_forward.1} parent=0 // pred_region
    _
  $region29: #{net_forward.1} parent=0 // pred_fallthru
    _
  %v29 = vld [vmem:[%s0] sm:$0xf]
  %v30 = vld [vmem:[%s1] sm:$0xff]
  %v31 = vld [vmem:[%s1 + $0x8] sm:$0xff]
  %v32 = vld [vmem:[%s1 + $0x10] sm:$0xff]
  %v33 = vld [vmem:[%s1 + $0x18] sm:$0xff]
  %v34 = vld [vmem:[%s1 + $0x20] sm:$0xff]
  %v35 = vld [vmem:[%s1 + $0x28] sm:$0xff]
  %v36 = vld [vmem:[%s1 + $0x30] sm:$0xff]
  %v37 = vld [vmem:[%s1 + $0x38] sm:$0xff]
  %v38 = vld [vmem:[%s1 + $0x40] sm:$0xff]
  %v39 = vld [vmem:[%s1 + $0x48] sm:$0xff]
  %v40 = vld [vmem:[%s1 + $0x50] sm:$0xff]
  %v41 = vld [vmem:[%s1 + $0x58] sm:$0xff]
  %v42 = vld [vmem:[%s1 + $0x60] sm:$0xff]
  %v43 = vld [vmem:[%s1 + $0x68] sm:$0xff]
  %v44 = vld [vmem:[%s1 + $0x70] sm:$0xff]
  %v45 = vld [vmem:[%s1 + $0x78] sm:$0xff]
  %v46 = vld [vmem:[%s1 + $0x80] sm:$0xff]
  %v47 = vld [vmem:[%s1 + $0x88] sm:$0xff]
  %v48 = vld [vmem:[%s1 + $0x90] sm:$0xff]
  %v49 = vld [vmem:[%s1 + $0x98] sm:$0xff]
  %v50 = vld [vmem:[%s1 + $0xa0] sm:$0xff]
  %v51 = vld [vmem:[%s1 + $0xa8] sm:$0xff]
  %v52 = vld [vmem:[%s1 + $0xb0] sm:$0xff]
  %v53 = vld [vmem:[%s1 + $0xb8] sm:$0xff]
  %v54 = vld [vmem:[%s1 + $0xc0] sm:$0xff]
  %v55 = vld [vmem:[%s1 + $0xc8] sm:$0xff]
  %v56 = vld [vmem:[%s1 + $0xd0] sm:$0xff]
  %v57 = vld [vmem:[%s1 + $0xd8] sm:$0xff]
  %v58 = vld [vmem:[%s1 + $0xe0] sm:$0xff]
  %v59 = vld [vmem:[%s1 + $0xe8] sm:$0xff]
  %v60 = vld [vmem:[%s1 + $0xf0] sm:$0xff]
  %v61 = vld [vmem:[%s1 + $0xf8] sm:$0xff]
  %v62 = vld [vmem:[%s1 + $0x100] sm:$0xff]
  %v63 = vld [vmem:[%s1 + $0x108] sm:$0xff]
  %v64 = vld [vmem:[%s1 + $0x110] sm:$0xff]
  %v65 = vld [vmem:[%s1 + $0x118] sm:$0xff]
  %v66 = vld [vmem:[%s1 + $0x120] sm:$0xff]
  %v67 = vld [vmem:[%s1 + $0x128] sm:$0xff]
  %v68 = vld [vmem:[%s1 + $0x130] sm:$0xff]
  %v69 = vld [vmem:[%s1 + $0x138] sm:$0xff]
  %v70 = vld [vmem:[%s1 + $0x140] sm:$0xff]
  %v71 = vld [vmem:[%s1 + $0x148] sm:$0xff]
  %v72 = vld [vmem:[%s1 + $0x150] sm:$0xff]
  %v73 = vld [vmem:[%s1 + $0x158] sm:$0xff]
  %v74 = vld [vmem:[%s1 + $0x160] sm:$0xff]
  %v75 = vld [vmem:[%s1 + $0x168] sm:$0xff]
  %v76 = vld [vmem:[%s1 + $0x170] sm:$0xff]
  %v77 = vld [vmem:[%s1 + $0x178] sm:$0xff]
  %v78 = vld [vmem:[%s1 + $0x180] sm:$0xff]
  %v79 = vld [vmem:[%s1 + $0x188] sm:$0xff]
  %v80 = vld [vmem:[%s1 + $0x190] sm:$0xff]
  %v81 = vld [vmem:[%s1 + $0x198] sm:$0xff]
  %v82 = vld [vmem:[%s1 + $0x1a0] sm:$0xff]
  %v83 = vld [vmem:[%s1 + $0x1a8] sm:$0xff]
  %v84 = vld [vmem:[%s1 + $0x1b0] sm:$0xff]
  %v85 = vld [vmem:[%s1 + $0x1b8] sm:$0xff]
  %v86 = vld [vmem:[%s1 + $0x1c0] sm:$0xff]
  %v87 = vld [vmem:[%s1 + $0x1c8] sm:$0xff]
  %v88 = vld [vmem:[%s1 + $0x1d0] sm:$0xff]
  %v89 = vld [vmem:[%s1 + $0x1d8] sm:$0xff]
  %v90 = vld [vmem:[%s1 + $0x1e0] sm:$0xff]
  %v91 = vld [vmem:[%s1 + $0x1e8] sm:$0xff]
  %v92 = vld [vmem:[%s1 + $0x1f0] sm:$0xff]
  %v93 = vld [vmem:[%s1 + $0x1f8] sm:$0xff]
  %v94 = vld [vmem:[%s2] sm:$0xff]
  %v96 = vlaneseq
  %v97 = vshrl.u32 %v96, 7
  %v98 = vsub.s32 0, %v97
  %v99 = vrot.slane %v94, %v98
  %v100 = vlaneseq
  %v101 = vshrl.u32 %v100, 7
  %v102 = vsub.s32 1, %v101
  %v103 = vrot.slane %v94, %v102
  %v104 = vlaneseq
  %v105 = vshrl.u32 %v104, 7
  %v106 = vsub.s32 2, %v105
  %v107 = vrot.slane %v94, %v106
  %v108 = vlaneseq
  %v109 = vshrl.u32 %v108, 7
  %v110 = vsub.s32 3, %v109
  %v111 = vrot.slane %v94, %v110
  %v112 = vlaneseq
  %v113 = vshrl.u32 %v112, 7
  %v114 = vsub.s32 4, %v113
  %v115 = vrot.slane %v94, %v114
  %v116 = vlaneseq
  %v117 = vshrl.u32 %v116, 7
  %v118 = vsub.s32 5, %v117
  %v119 = vrot.slane %v94, %v118
  %v120 = vlaneseq
  %v121 = vshrl.u32 %v120, 7
  %v122 = vsub.s32 6, %v121
  %v123 = vrot.slane %v94, %v122
  %v124 = vlaneseq
  %v125 = vshrl.u32 %v124, 7
  %v126 = vsub.s32 7, %v125
  %v127 = vrot.slane %v94, %v126
  %v200 = vunpack.c.l.b16 %v30
  %v201 = vunpack.c.h.b16 %v30
  %v202 = vunpack.c.l.b16 %v31
  %v203 = vunpack.c.h.b16 %v31
  %v204 = vunpack.c.l.b16 %v32
  %v205 = vunpack.c.h.b16 %v32
  %v206 = vunpack.c.l.b16 %v33
  %v207 = vunpack.c.h.b16 %v33
  %v208 = vunpack.c.l.b16 %v34
  %v209 = vunpack.c.h.b16 %v34
  %v210 = vunpack.c.l.b16 %v35
  %v211 = vunpack.c.h.b16 %v35
  %v212 = vunpack.c.l.b16 %v36
  %v213 = vunpack.c.h.b16 %v36
  %v214 = vunpack.c.l.b16 %v37
  %v215 = vunpack.c.h.b16 %v37
  %v216 = vunpack.c.l.b16 %v38
  %v217 = vunpack.c.h.b16 %v38
  %v218 = vunpack.c.l.b16 %v39
  %v219 = vunpack.c.h.b16 %v39
  %v220 = vunpack.c.l.b16 %v40
  %v221 = vunpack.c.h.b16 %v40
  %v222 = vunpack.c.l.b16 %v41
  %v223 = vunpack.c.h.b16 %v41
  %v224 = vunpack.c.l.b16 %v42
  %v225 = vunpack.c.h.b16 %v42
  %v226 = vunpack.c.l.b16 %v43
  %v227 = vunpack.c.h.b16 %v43
  %v228 = vunpack.c.l.b16 %v44
  %v229 = vunpack.c.h.b16 %v44
  %v230 = vunpack.c.l.b16 %v45
  %v231 = vunpack.c.h.b16 %v45
  %v232 = vunpack.c.l.b16 %v46
  %v233 = vunpack.c.h.b16 %v46
  %v234 = vunpack.c.l.b16 %v47
  %v235 = vunpack.c.h.b16 %v47
  %v236 = vunpack.c.l.b16 %v48
  %v237 = vunpack.c.h.b16 %v48
  %v238 = vunpack.c.l.b16 %v49
  %v239 = vunpack.c.h.b16 %v49
  %v240 = vunpack.c.l.b16 %v50
  %v241 = vunpack.c.h.b16 %v50
  %v242 = vunpack.c.l.b16 %v51
  %v243 = vunpack.c.h.b16 %v51
  %v244 = vunpack.c.l.b16 %v52
  %v245 = vunpack.c.h.b16 %v52
  %v246 = vunpack.c.l.b16 %v53
  %v247 = vunpack.c.h.b16 %v53
  %v248 = vunpack.c.l.b16 %v54
  %v249 = vunpack.c.h.b16 %v54
  %v250 = vunpack.c.l.b16 %v55
  %v251 = vunpack.c.h.b16 %v55
  %v252 = vunpack.c.l.b16 %v56
  %v253 = vunpack.c.h.b16 %v56
  %v254 = vunpack.c.l.b16 %v57
  %v255 = vunpack.c.h.b16 %v57
  %v256 = vunpack.c.l.b16 %v58
  %v257 = vunpack.c.h.b16 %v58
  %v258 = vunpack.c.l.b16 %v59
  %v259 = vunpack.c.h.b16 %v59
  %v260 = vunpack.c.l.b16 %v60
  %v261 = vunpack.c.h.b16 %v60
  %v262 = vunpack.c.l.b16 %v61
  %v263 = vunpack.c.h.b16 %v61
  %v264 = vunpack.c.l.b16 %v62
  %v265 = vunpack.c.h.b16 %v62
  %v266 = vunpack.c.l.b16 %v63
  %v267 = vunpack.c.h.b16 %v63
  %v268 = vunpack.c.l.b16 %v64
  %v269 = vunpack.c.h.b16 %v64
  %v270 = vunpack.c.l.b16 %v65
  %v271 = vunpack.c.h.b16 %v65
  %v272 = vunpack.c.l.b16 %v66
  %v273 = vunpack.c.h.b16 %v66
  %v274 = vunpack.c.l.b16 %v67
  %v275 = vunpack.c.h.b16 %v67
  %v276 = vunpack.c.l.b16 %v68
  %v277 = vunpack.c.h.b16 %v68
  %v278 = vunpack.c.l.b16 %v69
  %v279 = vunpack.c.h.b16 %v69
  %v280 = vunpack.c.l.b16 %v70
  %v281 = vunpack.c.h.b16 %v70
  %v282 = vunpack.c.l.b16 %v71
  %v283 = vunpack.c.h.b16 %v71
  %v284 = vunpack.c.l.b16 %v72
  %v285 = vunpack.c.h.b16 %v72
  %v286 = vunpack.c.l.b16 %v73
  %v287 = vunpack.c.h.b16 %v73
  %v288 = vunpack.c.l.b16 %v74
  %v289 = vunpack.c.h.b16 %v74
  %v290 = vunpack.c.l.b16 %v75
  %v291 = vunpack.c.h.b16 %v75
  %v292 = vunpack.c.l.b16 %v76
  %v293 = vunpack.c.h.b16 %v76
  %v294 = vunpack.c.l.b16 %v77
  %v295 = vunpack.c.h.b16 %v77
  %v296 = vunpack.c.l.b16 %v78
  %v297 = vunpack.c.h.b16 %v78
  %v298 = vunpack.c.l.b16 %v79
  %v299 = vunpack.c.h.b16 %v79
  %v300 = vunpack.c.l.b16 %v80
  %v301 = vunpack.c.h.b16 %v80
  %v302 = vunpack.c.l.b16 %v81
  %v303 = vunpack.c.h.b16 %v81
  %v304 = vunpack.c.l.b16 %v82
  %v305 = vunpack.c.h.b16 %v82
  %v306 = vunpack.c.l.b16 %v83
  %v307 = vunpack.c.h.b16 %v83
  %v308 = vunpack.c.l.b16 %v84
  %v309 = vunpack.c.h.b16 %v84
  %v310 = vunpack.c.l.b16 %v85
  %v311 = vunpack.c.h.b16 %v85
  %v312 = vunpack.c.l.b16 %v86
  %v313 = vunpack.c.h.b16 %v86
  %v314 = vunpack.c.l.b16 %v87
  %v315 = vunpack.c.h.b16 %v87
  %v316 = vunpack.c.l.b16 %v88
  %v317 = vunpack.c.h.b16 %v88
  %v318 = vunpack.c.l.b16 %v89
  %v319 = vunpack.c.h.b16 %v89
  %v320 = vunpack.c.l.b16 %v90
  %v321 = vunpack.c.h.b16 %v90
  %v322 = vunpack.c.l.b16 %v91
  %v323 = vunpack.c.h.b16 %v91
  %v324 = vunpack.c.l.b16 %v92
  %v325 = vunpack.c.h.b16 %v92
  %v326 = vunpack.c.l.b16 %v93
  %v327 = vunpack.c.h.b16 %v93
  %v328 = vpack.c.b16 %v208, %v200
  %v329 = vpack.c.b16 %v209, %v201
  %v330 = vpack.c.b16 %v210, %v202
  %v331 = vpack.c.b16 %v211, %v203
  %v332 = vpack.c.b16 %v212, %v204
  %v333 = vpack.c.b16 %v213, %v205
  %v334 = vpack.c.b16 %v214, %v206
  %v335 = vpack.c.b16 %v215, %v207
  %v336 = vpack.c.b16 %v224, %v216
  %v337 = vpack.c.b16 %v225, %v217
  %v338 = vpack.c.b16 %v226, %v218
  %v339 = vpack.c.b16 %v227, %v219
  %v340 = vpack.c.b16 %v228, %v220
  %v341 = vpack.c.b16 %v229, %v221
  %v342 = vpack.c.b16 %v230, %v222
  %v343 = vpack.c.b16 %v231, %v223
  %v344 = vpack.c.b16 %v240, %v232
  %v345 = vpack.c.b16 %v241, %v233
  %v346 = vpack.c.b16 %v242, %v234
  %v347 = vpack.c.b16 %v243, %v235
  %v348 = vpack.c.b16 %v244, %v236
  %v349 = vpack.c.b16 %v245, %v237
  %v350 = vpack.c.b16 %v246, %v238
  %v351 = vpack.c.b16 %v247, %v239
  %v352 = vpack.c.b16 %v256, %v248
  %v353 = vpack.c.b16 %v257, %v249
  %v354 = vpack.c.b16 %v258, %v250
  %v355 = vpack.c.b16 %v259, %v251
  %v356 = vpack.c.b16 %v260, %v252
  %v357 = vpack.c.b16 %v261, %v253
  %v358 = vpack.c.b16 %v262, %v254
  %v359 = vpack.c.b16 %v263, %v255
  %v360 = vpack.c.b16 %v272, %v264
  %v361 = vpack.c.b16 %v273, %v265
  %v362 = vpack.c.b16 %v274, %v266
  %v363 = vpack.c.b16 %v275, %v267
  %v364 = vpack.c.b16 %v276, %v268
  %v365 = vpack.c.b16 %v277, %v269
  %v366 = vpack.c.b16 %v278, %v270
  %v367 = vpack.c.b16 %v279, %v271
  %v368 = vpack.c.b16 %v288, %v280
  %v369 = vpack.c.b16 %v289, %v281
  %v370 = vpack.c.b16 %v290, %v282
  %v371 = vpack.c.b16 %v291, %v283
  %v372 = vpack.c.b16 %v292, %v284
  %v373 = vpack.c.b16 %v293, %v285
  %v374 = vpack.c.b16 %v294, %v286
  %v375 = vpack.c.b16 %v295, %v287
  %v376 = vpack.c.b16 %v304, %v296
  %v377 = vpack.c.b16 %v305, %v297
  %v378 = vpack.c.b16 %v306, %v298
  %v379 = vpack.c.b16 %v307, %v299
  %v380 = vpack.c.b16 %v308, %v300
  %v381 = vpack.c.b16 %v309, %v301
  %v382 = vpack.c.b16 %v310, %v302
  %v383 = vpack.c.b16 %v311, %v303
  %v384 = vpack.c.b16 %v320, %v312
  %v385 = vpack.c.b16 %v321, %v313
  %v386 = vpack.c.b16 %v322, %v314
  %v387 = vpack.c.b16 %v323, %v315
  %v388 = vpack.c.b16 %v324, %v316
  %v389 = vpack.c.b16 %v325, %v317
  %v390 = vpack.c.b16 %v326, %v318
  %v391 = vpack.c.b16 %v327, %v319
  %456 = vmatprep.subr.bf16.mxu0 %v329
  %457 = vmatpush1.bf16.msra.mxu0 %v328
  %458 = vmatprep.subr.bf16.mxu0 %v337
  %459 = vmatpush1.bf16.msra.mxu0 %v336
  %460 = vmatprep.subr.bf16.mxu0 %v345
  %461 = vmatpush1.bf16.msra.mxu0 %v344
  %462 = vmatprep.subr.bf16.mxu0 %v353
  %463 = vmatpush1.bf16.msra.mxu0 %v352
  %464 = vmatprep.subr.bf16.mxu0 %v361
  %465 = vmatpush1.bf16.msra.mxu0 %v360
  %466 = vmatprep.subr.bf16.mxu0 %v369
  %467 = vmatpush1.bf16.msra.mxu0 %v368
  %468 = vmatprep.subr.bf16.mxu0 %v377
  %469 = vmatpush1.bf16.msra.mxu0 %v376
  %470 = vmatprep.subr.bf16.mxu0 %v385
  %471 = vmatpush1.bf16.msra.mxu0 %v384
  %472 = vmatprep.subr.bf16.mxu0 0
  %473 = vmatpush1.bf16.msra.mxu0 0
  %474 = vmatprep.subr.bf16.mxu0 0
  %475 = vmatpush1.bf16.msra.mxu0 0
  %476 = vmatprep.subr.bf16.mxu0 0
  %477 = vmatpush1.bf16.msra.mxu0 0
  %478 = vmatprep.subr.bf16.mxu0 0
  %479 = vmatpush1.bf16.msra.mxu0 0
  %480 = vmatprep.subr.bf16.mxu0 0
  %481 = vmatpush1.bf16.msra.mxu0 0
  %482 = vmatprep.subr.bf16.mxu0 0
  %483 = vmatpush1.bf16.msra.mxu0 0
  %484 = vmatprep.subr.bf16.mxu0 0
  %485 = vmatpush1.bf16.msra.mxu0 0
  %486 = vmatprep.subr.bf16.mxu0 0
  %487 = vmatpush1.bf16.msra.mxu0 0
  %488 = vmatprep.mubr.bf16.mxu0 0
  %489 = vmatmul.mubr.bf16.gmra.mrb[0].mxu0 %v29
  %v490 = vpop.f32.mrb[0].mxu0
  %v491 = vadd.f32 %v99, %v490
  %v492 = vpop.f32.mrb[0].mxu0
  %v493 = vadd.f32 %v103, %v492
  %v494 = vpop.f32.mrb[0].mxu0
  %v495 = vpop.f32.mrb[0].mxu0
  %496 = vdwg.mxu0
  %497 = vmatprep.subr.bf16.mxu0 %v331
  %498 = vmatpush1.bf16.msra.mxu0 %v330
  %499 = vmatprep.subr.bf16.mxu0 %v339
  %500 = vmatpush1.bf16.msra.mxu0 %v338
  %501 = vmatprep.subr.bf16.mxu0 %v347
  %502 = vmatpush1.bf16.msra.mxu0 %v346
  %503 = vmatprep.subr.bf16.mxu0 %v355
  %504 = vmatpush1.bf16.msra.mxu0 %v354
  %505 = vmatprep.subr.bf16.mxu0 %v363
  %506 = vmatpush1.bf16.msra.mxu0 %v362
  %507 = vmatprep.subr.bf16.mxu0 %v371
  %508 = vmatpush1.bf16.msra.mxu0 %v370
  %509 = vmatprep.subr.bf16.mxu0 %v379
  %510 = vmatpush1.bf16.msra.mxu0 %v378
  %511 = vmatprep.subr.bf16.mxu0 %v387
  %512 = vmatpush1.bf16.msra.mxu0 %v386
  %513 = vmatprep.subr.bf16.mxu0 0
  %514 = vmatpush1.bf16.msra.mxu0 0
  %515 = vmatprep.subr.bf16.mxu0 0
  %516 = vmatpush1.bf16.msra.mxu0 0
  %517 = vmatprep.subr.bf16.mxu0 0
  %518 = vmatpush1.bf16.msra.mxu0 0
  %519 = vmatprep.subr.bf16.mxu0 0
  %520 = vmatpush1.bf16.msra.mxu0 0
  %521 = vmatprep.subr.bf16.mxu0 0
  %522 = vmatpush1.bf16.msra.mxu0 0
  %523 = vmatprep.subr.bf16.mxu0 0
  %524 = vmatpush1.bf16.msra.mxu0 0
  %525 = vmatprep.subr.bf16.mxu0 0
  %526 = vmatpush1.bf16.msra.mxu0 0
  %527 = vmatprep.subr.bf16.mxu0 0
  %528 = vmatpush1.bf16.msra.mxu0 0
  %529 = vmatprep.mubr.bf16.mxu0 0
  %530 = vmatmul.mubr.bf16.gmra.mrb[0].mxu0 %v29
  %v531 = vpop.f32.mrb[0].mxu0
  %v532 = vadd.f32 %v107, %v531
  %v533 = vpop.f32.mrb[0].mxu0
  %v534 = vadd.f32 %v111, %v533
  %v535 = vpop.f32.mrb[0].mxu0
  %v536 = vpop.f32.mrb[0].mxu0
  %537 = vdwg.mxu0
  %538 = vmatprep.subr.bf16.mxu0 %v333
  %539 = vmatpush1.bf16.msra.mxu0 %v332
  %540 = vmatprep.subr.bf16.mxu0 %v341
  %541 = vmatpush1.bf16.msra.mxu0 %v340
  %542 = vmatprep.subr.bf16.mxu0 %v349
  %543 = vmatpush1.bf16.msra.mxu0 %v348
  %544 = vmatprep.subr.bf16.mxu0 %v357
  %545 = vmatpush1.bf16.msra.mxu0 %v356
  %546 = vmatprep.subr.bf16.mxu0 %v365
  %547 = vmatpush1.bf16.msra.mxu0 %v364
  %548 = vmatprep.subr.bf16.mxu0 %v373
  %549 = vmatpush1.bf16.msra.mxu0 %v372
  %550 = vmatprep.subr.bf16.mxu0 %v381
  %551 = vmatpush1.bf16.msra.mxu0 %v380
  %552 = vmatprep.subr.bf16.mxu0 %v389
  %553 = vmatpush1.bf16.msra.mxu0 %v388
  %554 = vmatprep.subr.bf16.mxu0 0
  %555 = vmatpush1.bf16.msra.mxu0 0
  %556 = vmatprep.subr.bf16.mxu0 0
  %557 = vmatpush1.bf16.msra.mxu0 0
  %558 = vmatprep.subr.bf16.mxu0 0
  %559 = vmatpush1.bf16.msra.mxu0 0
  %560 = vmatprep.subr.bf16.mxu0 0
  %561 = vmatpush1.bf16.msra.mxu0 0
  %562 = vmatprep.subr.bf16.mxu0 0
  %563 = vmatpush1.bf16.msra.mxu0 0
  %564 = vmatprep.subr.bf16.mxu0 0
  %565 = vmatpush1.bf16.msra.mxu0 0
  %566 = vmatprep.subr.bf16.mxu0 0
  %567 = vmatpush1.bf16.msra.mxu0 0
  %568 = vmatprep.subr.bf16.mxu0 0
  %569 = vmatpush1.bf16.msra.mxu0 0
  %570 = vmatprep.mubr.bf16.mxu0 0
  %571 = vmatmul.mubr.bf16.gmra.mrb[0].mxu0 %v29
  %v572 = vpop.f32.mrb[0].mxu0
  %v573 = vadd.f32 %v115, %v572
  %v574 = vpop.f32.mrb[0].mxu0
  %v575 = vadd.f32 %v119, %v574
  %v576 = vpop.f32.mrb[0].mxu0
  %v577 = vpop.f32.mrb[0].mxu0
  %578 = vdwg.mxu0
  %579 = vmatprep.subr.bf16.mxu0 %v335
  %580 = vmatpush1.bf16.msra.mxu0 %v334
  %581 = vmatprep.subr.bf16.mxu0 %v343
  %582 = vmatpush1.bf16.msra.mxu0 %v342
  %583 = vmatprep.subr.bf16.mxu0 %v351
  %584 = vmatpush1.bf16.msra.mxu0 %v350
  %585 = vmatprep.subr.bf16.mxu0 %v359
  %586 = vmatpush1.bf16.msra.mxu0 %v358
  %587 = vmatprep.subr.bf16.mxu0 %v367
  %588 = vmatpush1.bf16.msra.mxu0 %v366
  %589 = vmatprep.subr.bf16.mxu0 %v375
  %590 = vmatpush1.bf16.msra.mxu0 %v374
  %591 = vmatprep.subr.bf16.mxu0 %v383
  %592 = vmatpush1.bf16.msra.mxu0 %v382
  %593 = vmatprep.subr.bf16.mxu0 %v391
  %594 = vmatpush1.bf16.msra.mxu0 %v390
  %595 = vmatprep.subr.bf16.mxu0 0
  %596 = vmatpush1.bf16.msra.mxu0 0
  %597 = vmatprep.subr.bf16.mxu0 0
  %598 = vmatpush1.bf16.msra.mxu0 0
  %599 = vmatprep.subr.bf16.mxu0 0
  %600 = vmatpush1.bf16.msra.mxu0 0
  %601 = vmatprep.subr.bf16.mxu0 0
  %602 = vmatpush1.bf16.msra.mxu0 0
  %603 = vmatprep.subr.bf16.mxu0 0
  %604 = vmatpush1.bf16.msra.mxu0 0
  %605 = vmatprep.subr.bf16.mxu0 0
  %606 = vmatpush1.bf16.msra.mxu0 0
  %607 = vmatprep.subr.bf16.mxu0 0
  %608 = vmatpush1.bf16.msra.mxu0 0
  %609 = vmatprep.subr.bf16.mxu0 0
  %610 = vmatpush1.bf16.msra.mxu0 0
  %611 = vmatprep.mubr.bf16.mxu0 0
  %612 = vmatmul.mubr.bf16.gmra.mrb[0].mxu0 %v29
  %v613 = vpop.f32.mrb[0].mxu0
  %v614 = vadd.f32 %v123, %v613
  %v615 = vpop.f32.mrb[0].mxu0
  %v616 = vadd.f32 %v127, %v615
  %v617 = vpop.f32.mrb[0].mxu0
  %v618 = vpop.f32.mrb[0].mxu0
  %619 = vdwg.mxu0
  %v620 = vmax.f32 %v491, 0.0
  %v621 = vmax.f32 %v493, 0.0
  %v622 = vmax.f32 %v532, 0.0
  %v623 = vmax.f32 %v534, 0.0
  %v624 = vmax.f32 %v573, 0.0
  %v625 = vmax.f32 %v575, 0.0
  %v626 = vmax.f32 %v614, 0.0
  %v627 = vmax.f32 %v616, 0.0
  %v628 = vpack.c.bf16 %v620, %v620
  %v629 = vpack.c.bf16 %v621, %v621
  %v630 = vpack.c.bf16 %v622, %v622
  %v631 = vpack.c.bf16 %v623, %v623
  %v632 = vpack.c.bf16 %v624, %v624
  %v633 = vpack.c.bf16 %v625, %v625
  %v634 = vpack.c.bf16 %v626, %v626
  %v635 = vpack.c.bf16 %v627, %v627
  %v636 = vld [vmem:[%s3] sm:$0xff]
  %v637 = vld [vmem:[%s3 + $0x8] sm:$0xff]
  %v638 = vld [vmem:[%s3 + $0x10] sm:$0xff]
  %v639 = vld [vmem:[%s3 + $0x18] sm:$0xff]
  %v640 = vld [vmem:[%s3 + $0x20] sm:$0xff]
  %v641 = vld [vmem:[%s3 + $0x28] sm:$0xff]
  %v642 = vld [vmem:[%s3 + $0x30] sm:$0xff]
  %v643 = vld [vmem:[%s3 + $0x38] sm:$0xff]
  %v644 = vld [vmem:[%s3 + $0x40] sm:$0xff]
  %v645 = vld [vmem:[%s3 + $0x48] sm:$0xff]
  %v646 = vld [vmem:[%s3 + $0x50] sm:$0xff]
  %v647 = vld [vmem:[%s3 + $0x58] sm:$0xff]
  %v648 = vld [vmem:[%s3 + $0x60] sm:$0xff]
  %v649 = vld [vmem:[%s3 + $0x68] sm:$0xff]
  %v650 = vld [vmem:[%s3 + $0x70] sm:$0xff]
  %v651 = vld [vmem:[%s3 + $0x78] sm:$0xff]
  %v652 = vld [vmem:[%s3 + $0x80] sm:$0xff]
  %v653 = vld [vmem:[%s3 + $0x88] sm:$0xff]
  %v654 = vld [vmem:[%s3 + $0x90] sm:$0xff]
  %v655 = vld [vmem:[%s3 + $0x98] sm:$0xff]
  %v656 = vld [vmem:[%s3 + $0xa0] sm:$0xff]
  %v657 = vld [vmem:[%s3 + $0xa8] sm:$0xff]
  %v658 = vld [vmem:[%s3 + $0xb0] sm:$0xff]
  %v659 = vld [vmem:[%s3 + $0xb8] sm:$0xff]
  %v660 = vld [vmem:[%s3 + $0xc0] sm:$0xff]
  %v661 = vld [vmem:[%s3 + $0xc8] sm:$0xff]
  %v662 = vld [vmem:[%s3 + $0xd0] sm:$0xff]
  %v663 = vld [vmem:[%s3 + $0xd8] sm:$0xff]
  %v664 = vld [vmem:[%s3 + $0xe0] sm:$0xff]
  %v665 = vld [vmem:[%s3 + $0xe8] sm:$0xff]
  %v666 = vld [vmem:[%s3 + $0xf0] sm:$0xff]
  %v667 = vld [vmem:[%s3 + $0xf8] sm:$0xff]
  %v668 = vld [vmem:[%s3 + $0x100] sm:$0xff]
  %v669 = vld [vmem:[%s3 + $0x108] sm:$0xff]
  %v670 = vld [vmem:[%s3 + $0x110] sm:$0xff]
  %v671 = vld [vmem:[%s3 + $0x118] sm:$0xff]
  %v672 = vld [vmem:[%s3 + $0x120] sm:$0xff]
  %v673 = vld [vmem:[%s3 + $0x128] sm:$0xff]
  %v674 = vld [vmem:[%s3 + $0x130] sm:$0xff]
  %v675 = vld [vmem:[%s3 + $0x138] sm:$0xff]
  %v676 = vld [vmem:[%s3 + $0x140] sm:$0xff]
  %v677 = vld [vmem:[%s3 + $0x148] sm:$0xff]
  %v678 = vld [vmem:[%s3 + $0x150] sm:$0xff]
  %v679 = vld [vmem:[%s3 + $0x158] sm:$0xff]
  %v680 = vld [vmem:[%s3 + $0x160] sm:$0xff]
  %v681 = vld [vmem:[%s3 + $0x168] sm:$0xff]
  %v682 = vld [vmem:[%s3 + $0x170] sm:$0xff]
  %v683 = vld [vmem:[%s3 + $0x178] sm:$0xff]
  %v684 = vld [vmem:[%s3 + $0x180] sm:$0xff]
  %v685 = vld [vmem:[%s3 + $0x188] sm:$0xff]
  %v686 = vld [vmem:[%s3 + $0x190] sm:$0xff]
  %v687 = vld [vmem:[%s3 + $0x198] sm:$0xff]
  %v688 = vld [vmem:[%s3 + $0x1a0] sm:$0xff]
  %v689 = vld [vmem:[%s3 + $0x1a8] sm:$0xff]
  %v690 = vld [vmem:[%s3 + $0x1b0] sm:$0xff]
  %v691 = vld [vmem:[%s3 + $0x1b8] sm:$0xff]
  %v692 = vld [vmem:[%s3 + $0x1c0] sm:$0xff]
  %v693 = vld [vmem:[%s3 + $0x1c8] sm:$0xff]
  %v694 = vld [vmem:[%s3 + $0x1d0] sm:$0xff]
  %v695 = vld [vmem:[%s3 + $0x1d8] sm:$0xff]
  %v696 = vld [vmem:[%s3 + $0x1e0] sm:$0xff]
  %v697 = vld [vmem:[%s3 + $0x1e8] sm:$0xff]
  %v698 = vld [vmem:[%s3 + $0x1f0] sm:$0xff]
  %v699 = vld [vmem:[%s3 + $0x1f8] sm:$0xff]
  %v700 = vld [vmem:[%s3 + $0x200] sm:$0xff]
  %v701 = vld [vmem:[%s3 + $0x208] sm:$0xff]
  %v702 = vld [vmem:[%s3 + $0x210] sm:$0xff]
  %v703 = vld [vmem:[%s3 + $0x218] sm:$0xff]
  %v704 = vld [vmem:[%s3 + $0x220] sm:$0xff]
  %v705 = vld [vmem:[%s3 + $0x228] sm:$0xff]
  %v706 = vld [vmem:[%s3 + $0x230] sm:$0xff]
  %v707 = vld [vmem:[%s3 + $0x238] sm:$0xff]
  %v708 = vld [vmem:[%s3 + $0x240] sm:$0xff]
  %v709 = vld [vmem:[%s3 + $0x248] sm:$0xff]
  %v710 = vld [vmem:[%s3 + $0x250] sm:$0xff]
  %v711 = vld [vmem:[%s3 + $0x258] sm:$0xff]
  %v712 = vld [vmem:[%s3 + $0x260] sm:$0xff]
  %v713 = vld [vmem:[%s3 + $0x268] sm:$0xff]
  %v714 = vld [vmem:[%s3 + $0x270] sm:$0xff]
  %v715 = vld [vmem:[%s3 + $0x278] sm:$0xff]
  %v716 = vld [vmem:[%s3 + $0x280] sm:$0xff]
  %v717 = vld [vmem:[%s3 + $0x288] sm:$0xff]
  %v718 = vld [vmem:[%s3 + $0x290] sm:$0xff]
  %v719 = vld [vmem:[%s3 + $0x298] sm:$0xff]
  %v720 = vld [vmem:[%s3 + $0x2a0] sm:$0xff]
  %v721 = vld [vmem:[%s3 + $0x2a8] sm:$0xff]
  %v722 = vld [vmem:[%s3 + $0x2b0] sm:$0xff]
  %v723 = vld [vmem:[%s3 + $0x2b8] sm:$0xff]
  %v724 = vld [vmem:[%s3 + $0x2c0] sm:$0xff]
  %v725 = vld [vmem:[%s3 + $0x2c8] sm:$0xff]
  %v726 = vld [vmem:[%s3 + $0x2d0] sm:$0xff]
  %v727 = vld [vmem:[%s3 + $0x2d8] sm:$0xff]
  %v728 = vld [vmem:[%s3 + $0x2e0] sm:$0xff]
  %v729 = vld [vmem:[%s3 + $0x2e8] sm:$0xff]
  %v730 = vld [vmem:[%s3 + $0x2f0] sm:$0xff]
  %v731 = vld [vmem:[%s3 + $0x2f8] sm:$0xff]
  %v732 = vld [vmem:[%s3 + $0x300] sm:$0xff]
  %v733 = vld [vmem:[%s3 + $0x308] sm:$0xff]
  %v734 = vld [vmem:[%s3 + $0x310] sm:$0xff]
  %v735 = vld [vmem:[%s3 + $0x318] sm:$0xff]
  %v736 = vld [vmem:[%s3 + $0x320] sm:$0xff]
  %v737 = vld [vmem:[%s3 + $0x328] sm:$0xff]
  %v738 = vld [vmem:[%s3 + $0x330] sm:$0xff]
  %v739 = vld [vmem:[%s3 + $0x338] sm:$0xff]
  %v740 = vld [vmem:[%s3 + $0x340] sm:$0xff]
  %v741 = vld [vmem:[%s3 + $0x348] sm:$0xff]
  %v742 = vld [vmem:[%s3 + $0x350] sm:$0xff]
  %v743 = vld [vmem:[%s3 + $0x358] sm:$0xff]
  %v744 = vld [vmem:[%s3 + $0x360] sm:$0xff]
  %v745 = vld [vmem:[%s3 + $0x368] sm:$0xff]
  %v746 = vld [vmem:[%s3 + $0x370] sm:$0xff]
  %v747 = vld [vmem:[%s3 + $0x378] sm:$0xff]
  %v748 = vld [vmem:[%s3 + $0x380] sm:$0xff]
  %v749 = vld [vmem:[%s3 + $0x388] sm:$0xff]
  %v750 = vld [vmem:[%s3 + $0x390] sm:$0xff]
  %v751 = vld [vmem:[%s3 + $0x398] sm:$0xff]
  %v752 = vld [vmem:[%s3 + $0x3a0] sm:$0xff]
  %v753 = vld [vmem:[%s3 + $0x3a8] sm:$0xff]
  %v754 = vld [vmem:[%s3 + $0x3b0] sm:$0xff]
  %v755 = vld [vmem:[%s3 + $0x3b8] sm:$0xff]
  %v756 = vld [vmem:[%s3 + $0x3c0] sm:$0xff]
  %v757 = vld [vmem:[%s3 + $0x3c8] sm:$0xff]
  %v758 = vld [vmem:[%s3 + $0x3d0] sm:$0xff]
  %v759 = vld [vmem:[%s3 + $0x3d8] sm:$0xff]
  %v760 = vld [vmem:[%s3 + $0x3e0] sm:$0xff]
  %v761 = vld [vmem:[%s3 + $0x3e8] sm:$0xff]
  %v762 = vld [vmem:[%s3 + $0x3f0] sm:$0xff]
  %v763 = vld [vmem:[%s3 + $0x3f8] sm:$0xff]
  %v764 = vld [vmem:[%s3 + $0x400] sm:$0xff]
  %v765 = vld [vmem:[%s3 + $0x408] sm:$0xff]
  %v766 = vld [vmem:[%s3 + $0x410] sm:$0xff]
  %v767 = vld [vmem:[%s3 + $0x418] sm:$0xff]
  %v768 = vld [vmem:[%s3 + $0x420] sm:$0xff]
  %v769 = vld [vmem:[%s3 + $0x428] sm:$0xff]
  %v770 = vld [vmem:[%s3 + $0x430] sm:$0xff]
  %v771 = vld [vmem:[%s3 + $0x438] sm:$0xff]
  %v772 = vld [vmem:[%s3 + $0x440] sm:$0xff]
  %v773 = vld [vmem:[%s3 + $0x448] sm:$0xff]
  %v774 = vld [vmem:[%s3 + $0x450] sm:$0xff]
  %v775 = vld [vmem:[%s3 + $0x458] sm:$0xff]
  %v776 = vld [vmem:[%s3 + $0x460] sm:$0xff]
  %v777 = vld [vmem:[%s3 + $0x468] sm:$0xff]
  %v778 = vld [vmem:[%s3 + $0x470] sm:$0xff]
  %v779 = vld [vmem:[%s3 + $0x478] sm:$0xff]
  %v780 = vld [vmem:[%s3 + $0x480] sm:$0xff]
  %v781 = vld [vmem:[%s3 + $0x488] sm:$0xff]
  %v782 = vld [vmem:[%s3 + $0x490] sm:$0xff]
  %v783 = vld [vmem:[%s3 + $0x498] sm:$0xff]
  %v784 = vld [vmem:[%s3 + $0x4a0] sm:$0xff]
  %v785 = vld [vmem:[%s3 + $0x4a8] sm:$0xff]
  %v786 = vld [vmem:[%s3 + $0x4b0] sm:$0xff]
  %v787 = vld [vmem:[%s3 + $0x4b8] sm:$0xff]
  %v788 = vld [vmem:[%s3 + $0x4c0] sm:$0xff]
  %v789 = vld [vmem:[%s3 + $0x4c8] sm:$0xff]
  %v790 = vld [vmem:[%s3 + $0x4d0] sm:$0xff]
  %v791 = vld [vmem:[%s3 + $0x4d8] sm:$0xff]
  %v792 = vld [vmem:[%s3 + $0x4e0] sm:$0xff]
  %v793 = vld [vmem:[%s3 + $0x4e8] sm:$0xff]
  %v794 = vld [vmem:[%s3 + $0x4f0] sm:$0xff]
  %v795 = vld [vmem:[%s3 + $0x4f8] sm:$0xff]
  %v796 = vld [vmem:[%s3 + $0x500] sm:$0xff]
  %v797 = vld [vmem:[%s3 + $0x508] sm:$0xff]
  %v798 = vld [vmem:[%s3 + $0x510] sm:$0xff]
  %v799 = vld [vmem:[%s3 + $0x518] sm:$0xff]
  %v800 = vld [vmem:[%s3 + $0x520] sm:$0xff]
  %v801 = vld [vmem:[%s3 + $0x528] sm:$0xff]
  %v802 = vld [vmem:[%s3 + $0x530] sm:$0xff]
  %v803 = vld [vmem:[%s3 + $0x538] sm:$0xff]
  %v804 = vld [vmem:[%s3 + $0x540] sm:$0xff]
  %v805 = vld [vmem:[%s3 + $0x548] sm:$0xff]
  %v806 = vld [vmem:[%s3 + $0x550] sm:$0xff]
  %v807 = vld [vmem:[%s3 + $0x558] sm:$0xff]
  %v808 = vld [vmem:[%s3 + $0x560] sm:$0xff]
  %v809 = vld [vmem:[%s3 + $0x568] sm:$0xff]
  %v810 = vld [vmem:[%s3 + $0x570] sm:$0xff]
  %v811 = vld [vmem:[%s3 + $0x578] sm:$0xff]
  %v812 = vld [vmem:[%s3 + $0x580] sm:$0xff]
  %v813 = vld [vmem:[%s3 + $0x588] sm:$0xff]
  %v814 = vld [vmem:[%s3 + $0x590] sm:$0xff]
  %v815 = vld [vmem:[%s3 + $0x598] sm:$0xff]
  %v816 = vld [vmem:[%s3 + $0x5a0] sm:$0xff]
  %v817 = vld [vmem:[%s3 + $0x5a8] sm:$0xff]
  %v818 = vld [vmem:[%s3 + $0x5b0] sm:$0xff]
  %v819 = vld [vmem:[%s3 + $0x5b8] sm:$0xff]
  %v820 = vld [vmem:[%s3 + $0x5c0] sm:$0xff]
  %v821 = vld [vmem:[%s3 + $0x5c8] sm:$0xff]
  %v822 = vld [vmem:[%s3 + $0x5d0] sm:$0xff]
  %v823 = vld [vmem:[%s3 + $0x5d8] sm:$0xff]
  %v824 = vld [vmem:[%s3 + $0x5e0] sm:$0xff]
  %v825 = vld [vmem:[%s3 + $0x5e8] sm:$0xff]
  %v826 = vld [vmem:[%s3 + $0x5f0] sm:$0xff]
  %v827 = vld [vmem:[%s3 + $0x5f8] sm:$0xff]
  %v828 = vld [vmem:[%s3 + $0x600] sm:$0xff]
  %v829 = vld [vmem:[%s3 + $0x608] sm:$0xff]
  %v830 = vld [vmem:[%s3 + $0x610] sm:$0xff]
  %v831 = vld [vmem:[%s3 + $0x618] sm:$0xff]
  %v832 = vld [vmem:[%s3 + $0x620] sm:$0xff]
  %v833 = vld [vmem:[%s3 + $0x628] sm:$0xff]
  %v834 = vld [vmem:[%s3 + $0x630] sm:$0xff]
  %v835 = vld [vmem:[%s3 + $0x638] sm:$0xff]
  %v836 = vld [vmem:[%s3 + $0x640] sm:$0xff]
  %v837 = vld [vmem:[%s3 + $0x648] sm:$0xff]
  %v838 = vld [vmem:[%s3 + $0x650] sm:$0xff]
  %v839 = vld [vmem:[%s3 + $0x658] sm:$0xff]
  %v840 = vld [vmem:[%s3 + $0x660] sm:$0xff]
  %v841 = vld [vmem:[%s3 + $0x668] sm:$0xff]
  %v842 = vld [vmem:[%s3 + $0x670] sm:$0xff]
  %v843 = vld [vmem:[%s3 + $0x678] sm:$0xff]
  %v844 = vld [vmem:[%s3 + $0x680] sm:$0xff]
  %v845 = vld [vmem:[%s3 + $0x688] sm:$0xff]
  %v846 = vld [vmem:[%s3 + $0x690] sm:$0xff]
  %v847 = vld [vmem:[%s3 + $0x698] sm:$0xff]
  %v848 = vld [vmem:[%s3 + $0x6a0] sm:$0xff]
  %v849 = vld [vmem:[%s3 + $0x6a8] sm:$0xff]
  %v850 = vld [vmem:[%s3 + $0x6b0] sm:$0xff]
  %v851 = vld [vmem:[%s3 + $0x6b8] sm:$0xff]
  %v852 = vld [vmem:[%s3 + $0x6c0] sm:$0xff]
  %v853 = vld [vmem:[%s3 + $0x6c8] sm:$0xff]
  %v854 = vld [vmem:[%s3 + $0x6d0] sm:$0xff]
  %v855 = vld [vmem:[%s3 + $0x6d8] sm:$0xff]
  %v856 = vld [vmem:[%s3 + $0x6e0] sm:$0xff]
  %v857 = vld [vmem:[%s3 + $0x6e8] sm:$0xff]
  %v858 = vld [vmem:[%s3 + $0x6f0] sm:$0xff]
  %v859 = vld [vmem:[%s3 + $0x6f8] sm:$0xff]
  %v860 = vld [vmem:[%s3 + $0x700] sm:$0xff]
  %v861 = vld [vmem:[%s3 + $0x708] sm:$0xff]
  %v862 = vld [vmem:[%s3 + $0x710] sm:$0xff]
  %v863 = vld [vmem:[%s3 + $0x718] sm:$0xff]
  %v864 = vld [vmem:[%s3 + $0x720] sm:$0xff]
  %v865 = vld [vmem:[%s3 + $0x728] sm:$0xff]
  %v866 = vld [vmem:[%s3 + $0x730] sm:$0xff]
  %v867 = vld [vmem:[%s3 + $0x738] sm:$0xff]
  %v868 = vld [vmem:[%s3 + $0x740] sm:$0xff]
  %v869 = vld [vmem:[%s3 + $0x748] sm:$0xff]
  %v870 = vld [vmem:[%s3 + $0x750] sm:$0xff]
  %v871 = vld [vmem:[%s3 + $0x758] sm:$0xff]
  %v872 = vld [vmem:[%s3 + $0x760] sm:$0xff]
  %v873 = vld [vmem:[%s3 + $0x768] sm:$0xff]
  %v874 = vld [vmem:[%s3 + $0x770] sm:$0xff]
  %v875 = vld [vmem:[%s3 + $0x778] sm:$0xff]
  %v876 = vld [vmem:[%s3 + $0x780] sm:$0xff]
  %v877 = vld [vmem:[%s3 + $0x788] sm:$0xff]
  %v878 = vld [vmem:[%s3 + $0x790] sm:$0xff]
  %v879 = vld [vmem:[%s3 + $0x798] sm:$0xff]
  %v880 = vld [vmem:[%s3 + $0x7a0] sm:$0xff]
  %v881 = vld [vmem:[%s3 + $0x7a8] sm:$0xff]
  %v882 = vld [vmem:[%s3 + $0x7b0] sm:$0xff]
  %v883 = vld [vmem:[%s3 + $0x7b8] sm:$0xff]
  %v884 = vld [vmem:[%s3 + $0x7c0] sm:$0xff]
  %v885 = vld [vmem:[%s3 + $0x7c8] sm:$0xff]
  %v886 = vld [vmem:[%s3 + $0x7d0] sm:$0xff]
  %v887 = vld [vmem:[%s3 + $0x7d8] sm:$0xff]
  %v888 = vld [vmem:[%s3 + $0x7e0] sm:$0xff]
  %v889 = vld [vmem:[%s3 + $0x7e8] sm:$0xff]
  %v890 = vld [vmem:[%s3 + $0x7f0] sm:$0xff]
  %v891 = vld [vmem:[%s3 + $0x7f8] sm:$0xff]
  %v892 = vld [vmem:[%s4] sm:$0xf]
  %v894 = vlaneseq
  %v895 = vshrl.u32 %v894, 7
  %v896 = vsub.s32 0, %v895
  %v897 = vrot.slane %v892, %v896
  %v898 = vlaneseq
  %v899 = vshrl.u32 %v898, 7
  %v900 = vsub.s32 1, %v899
  %v901 = vrot.slane %v892, %v900
  %v902 = vlaneseq
  %v903 = vshrl.u32 %v902, 7
  %v904 = vsub.s32 2, %v903
  %v905 = vrot.slane %v892, %v904
  %v906 = vlaneseq
  %v907 = vshrl.u32 %v906, 7
  %v908 = vsub.s32 3, %v907
  %v909 = vrot.slane %v892, %v908
  %v1170 = vunpack.c.l.b16 %v636
  %v1171 = vunpack.c.h.b16 %v636
  %v1172 = vunpack.c.l.b16 %v637
  %v1173 = vunpack.c.h.b16 %v637
  %v1174 = vunpack.c.l.b16 %v638
  %v1175 = vunpack.c.h.b16 %v638
  %v1176 = vunpack.c.l.b16 %v639
  %v1177 = vunpack.c.h.b16 %v639
  %v1178 = vunpack.c.l.b16 %v640
  %v1179 = vunpack.c.h.b16 %v640
  %v1180 = vunpack.c.l.b16 %v641
  %v1181 = vunpack.c.h.b16 %v641
  %v1182 = vunpack.c.l.b16 %v642
  %v1183 = vunpack.c.h.b16 %v642
  %v1184 = vunpack.c.l.b16 %v643
  %v1185 = vunpack.c.h.b16 %v643
  %v1186 = vunpack.c.l.b16 %v644
  %v1187 = vunpack.c.h.b16 %v644
  %v1188 = vunpack.c.l.b16 %v645
  %v1189 = vunpack.c.h.b16 %v645
  %v1190 = vunpack.c.l.b16 %v646
  %v1191 = vunpack.c.h.b16 %v646
  %v1192 = vunpack.c.l.b16 %v647
  %v1193 = vunpack.c.h.b16 %v647
  %v1194 = vunpack.c.l.b16 %v648
  %v1195 = vunpack.c.h.b16 %v648
  %v1196 = vunpack.c.l.b16 %v649
  %v1197 = vunpack.c.h.b16 %v649
  %v1198 = vunpack.c.l.b16 %v650
  %v1199 = vunpack.c.h.b16 %v650
  %v1200 = vunpack.c.l.b16 %v651
  %v1201 = vunpack.c.h.b16 %v651
  %v1202 = vunpack.c.l.b16 %v652
  %v1203 = vunpack.c.h.b16 %v652
  %v1204 = vunpack.c.l.b16 %v653
  %v1205 = vunpack.c.h.b16 %v653
  %v1206 = vunpack.c.l.b16 %v654
  %v1207 = vunpack.c.h.b16 %v654
  %v1208 = vunpack.c.l.b16 %v655
  %v1209 = vunpack.c.h.b16 %v655
  %v1210 = vunpack.c.l.b16 %v656
  %v1211 = vunpack.c.h.b16 %v656
  %v1212 = vunpack.c.l.b16 %v657
  %v1213 = vunpack.c.h.b16 %v657
  %v1214 = vunpack.c.l.b16 %v658
  %v1215 = vunpack.c.h.b16 %v658
  %v1216 = vunpack.c.l.b16 %v659
  %v1217 = vunpack.c.h.b16 %v659
  %v1218 = vunpack.c.l.b16 %v660
  %v1219 = vunpack.c.h.b16 %v660
  %v1220 = vunpack.c.l.b16 %v661
  %v1221 = vunpack.c.h.b16 %v661
  %v1222 = vunpack.c.l.b16 %v662
  %v1223 = vunpack.c.h.b16 %v662
  %v1224 = vunpack.c.l.b16 %v663
  %v1225 = vunpack.c.h.b16 %v663
  %v1226 = vunpack.c.l.b16 %v664
  %v1227 = vunpack.c.h.b16 %v664
  %v1228 = vunpack.c.l.b16 %v665
  %v1229 = vunpack.c.h.b16 %v665
  %v1230 = vunpack.c.l.b16 %v666
  %v1231 = vunpack.c.h.b16 %v666
  %v1232 = vunpack.c.l.b16 %v667
  %v1233 = vunpack.c.h.b16 %v667
  %v1234 = vunpack.c.l.b16 %v668
  %v1235 = vunpack.c.h.b16 %v668
  %v1236 = vunpack.c.l.b16 %v669
  %v1237 = vunpack.c.h.b16 %v669
  %v1238 = vunpack.c.l.b16 %v670
  %v1239 = vunpack.c.h.b16 %v670
  %v1240 = vunpack.c.l.b16 %v671
  %v1241 = vunpack.c.h.b16 %v671
  %v1242 = vunpack.c.l.b16 %v672
  %v1243 = vunpack.c.h.b16 %v672
  %v1244 = vunpack.c.l.b16 %v673
  %v1245 = vunpack.c.h.b16 %v673
  %v1246 = vunpack.c.l.b16 %v674
  %v1247 = vunpack.c.h.b16 %v674
  %v1248 = vunpack.c.l.b16 %v675
  %v1249 = vunpack.c.h.b16 %v675
  %v1250 = vunpack.c.l.b16 %v676
  %v1251 = vunpack.c.h.b16 %v676
  %v1252 = vunpack.c.l.b16 %v677
  %v1253 = vunpack.c.h.b16 %v677
  %v1254 = vunpack.c.l.b16 %v678
  %v1255 = vunpack.c.h.b16 %v678
  %v1256 = vunpack.c.l.b16 %v679
  %v1257 = vunpack.c.h.b16 %v679
  %v1258 = vunpack.c.l.b16 %v680
  %v1259 = vunpack.c.h.b16 %v680
  %v1260 = vunpack.c.l.b16 %v681
  %v1261 = vunpack.c.h.b16 %v681
  %v1262 = vunpack.c.l.b16 %v682
  %v1263 = vunpack.c.h.b16 %v682
  %v1264 = vunpack.c.l.b16 %v683
  %v1265 = vunpack.c.h.b16 %v683
  %v1266 = vunpack.c.l.b16 %v684
  %v1267 = vunpack.c.h.b16 %v684
  %v1268 = vunpack.c.l.b16 %v685
  %v1269 = vunpack.c.h.b16 %v685
  %v1270 = vunpack.c.l.b16 %v686
  %v1271 = vunpack.c.h.b16 %v686
  %v1272 = vunpack.c.l.b16 %v687
  %v1273 = vunpack.c.h.b16 %v687
  %v1274 = vunpack.c.l.b16 %v688
  %v1275 = vunpack.c.h.b16 %v688
  %v1276 = vunpack.c.l.b16 %v689
  %v1277 = vunpack.c.h.b16 %v689
  %v1278 = vunpack.c.l.b16 %v690
  %v1279 = vunpack.c.h.b16 %v690
  %v1280 = vunpack.c.l.b16 %v691
  %v1281 = vunpack.c.h.b16 %v691
  %v1282 = vunpack.c.l.b16 %v692
  %v1283 = vunpack.c.h.b16 %v692
  %v1284 = vunpack.c.l.b16 %v693
  %v1285 = vunpack.c.h.b16 %v693
  %v1286 = vunpack.c.l.b16 %v694
  %v1287 = vunpack.c.h.b16 %v694
  %v1288 = vunpack.c.l.b16 %v695
  %v1289 = vunpack.c.h.b16 %v695
  %v1290 = vunpack.c.l.b16 %v696
  %v1291 = vunpack.c.h.b16 %v696
  %v1292 = vunpack.c.l.b16 %v697
  %v1293 = vunpack.c.h.b16 %v697
  %v1294 = vunpack.c.l.b16 %v698
  %v1295 = vunpack.c.h.b16 %v698
  %v1296 = vunpack.c.l.b16 %v699
  %v1297 = vunpack.c.h.b16 %v699
  %v1298 = vunpack.c.l.b16 %v700
  %v1299 = vunpack.c.h.b16 %v700
  %v1300 = vunpack.c.l.b16 %v701
  %v1301 = vunpack.c.h.b16 %v701
  %v1302 = vunpack.c.l.b16 %v702
  %v1303 = vunpack.c.h.b16 %v702
  %v1304 = vunpack.c.l.b16 %v703
  %v1305 = vunpack.c.h.b16 %v703
  %v1306 = vunpack.c.l.b16 %v704
  %v1307 = vunpack.c.h.b16 %v704
  %v1308 = vunpack.c.l.b16 %v705
  %v1309 = vunpack.c.h.b16 %v705
  %v1310 = vunpack.c.l.b16 %v706
  %v1311 = vunpack.c.h.b16 %v706
  %v1312 = vunpack.c.l.b16 %v707
  %v1313 = vunpack.c.h.b16 %v707
  %v1314 = vunpack.c.l.b16 %v708
  %v1315 = vunpack.c.h.b16 %v708
  %v1316 = vunpack.c.l.b16 %v709
  %v1317 = vunpack.c.h.b16 %v709
  %v1318 = vunpack.c.l.b16 %v710
  %v1319 = vunpack.c.h.b16 %v710
  %v1320 = vunpack.c.l.b16 %v711
  %v1321 = vunpack.c.h.b16 %v711
  %v1322 = vunpack.c.l.b16 %v712
  %v1323 = vunpack.c.h.b16 %v712
  %v1324 = vunpack.c.l.b16 %v713
  %v1325 = vunpack.c.h.b16 %v713
  %v1326 = vunpack.c.l.b16 %v714
  %v1327 = vunpack.c.h.b16 %v714
  %v1328 = vunpack.c.l.b16 %v715
  %v1329 = vunpack.c.h.b16 %v715
  %v1330 = vunpack.c.l.b16 %v716
  %v1331 = vunpack.c.h.b16 %v716
  %v1332 = vunpack.c.l.b16 %v717
  %v1333 = vunpack.c.h.b16 %v717
  %v1334 = vunpack.c.l.b16 %v718
  %v1335 = vunpack.c.h.b16 %v718
  %v1336 = vunpack.c.l.b16 %v719
  %v1337 = vunpack.c.h.b16 %v719
  %v1338 = vunpack.c.l.b16 %v720
  %v1339 = vunpack.c.h.b16 %v720
  %v1340 = vunpack.c.l.b16 %v721
  %v1341 = vunpack.c.h.b16 %v721
  %v1342 = vunpack.c.l.b16 %v722
  %v1343 = vunpack.c.h.b16 %v722
  %v1344 = vunpack.c.l.b16 %v723
  %v1345 = vunpack.c.h.b16 %v723
  %v1346 = vunpack.c.l.b16 %v724
  %v1347 = vunpack.c.h.b16 %v724
  %v1348 = vunpack.c.l.b16 %v725
  %v1349 = vunpack.c.h.b16 %v725
  %v1350 = vunpack.c.l.b16 %v726
  %v1351 = vunpack.c.h.b16 %v726
  %v1352 = vunpack.c.l.b16 %v727
  %v1353 = vunpack.c.h.b16 %v727
  %v1354 = vunpack.c.l.b16 %v728
  %v1355 = vunpack.c.h.b16 %v728
  %v1356 = vunpack.c.l.b16 %v729
  %v1357 = vunpack.c.h.b16 %v729
  %v1358 = vunpack.c.l.b16 %v730
  %v1359 = vunpack.c.h.b16 %v730
  %v1360 = vunpack.c.l.b16 %v731
  %v1361 = vunpack.c.h.b16 %v731
  %v1362 = vunpack.c.l.b16 %v732
  %v1363 = vunpack.c.h.b16 %v732
  %v1364 = vunpack.c.l.b16 %v733
  %v1365 = vunpack.c.h.b16 %v733
  %v1366 = vunpack.c.l.b16 %v734
  %v1367 = vunpack.c.h.b16 %v734
  %v1368 = vunpack.c.l.b16 %v735
  %v1369 = vunpack.c.h.b16 %v735
  %v1370 = vunpack.c.l.b16 %v736
  %v1371 = vunpack.c.h.b16 %v736
  %v1372 = vunpack.c.l.b16 %v737
  %v1373 = vunpack.c.h.b16 %v737
  %v1374 = vunpack.c.l.b16 %v738
  %v1375 = vunpack.c.h.b16 %v738
  %v1376 = vunpack.c.l.b16 %v739
  %v1377 = vunpack.c.h.b16 %v739
  %v1378 = vunpack.c.l.b16 %v740
  %v1379 = vunpack.c.h.b16 %v740
  %v1380 = vunpack.c.l.b16 %v741
  %v1381 = vunpack.c.h.b16 %v741
  %v1382 = vunpack.c.l.b16 %v742
  %v1383 = vunpack.c.h.b16 %v742
  %v1384 = vunpack.c.l.b16 %v743
  %v1385 = vunpack.c.h.b16 %v743
  %v1386 = vunpack.c.l.b16 %v744
  %v1387 = vunpack.c.h.b16 %v744
  %v1388 = vunpack.c.l.b16 %v745
  %v1389 = vunpack.c.h.b16 %v745
  %v1390 = vunpack.c.l.b16 %v746
  %v1391 = vunpack.c.h.b16 %v746
  %v1392 = vunpack.c.l.b16 %v747
  %v1393 = vunpack.c.h.b16 %v747
  %v1394 = vunpack.c.l.b16 %v748
  %v1395 = vunpack.c.h.b16 %v748
  %v1396 = vunpack.c.l.b16 %v749
  %v1397 = vunpack.c.h.b16 %v749
  %v1398 = vunpack.c.l.b16 %v750
  %v1399 = vunpack.c.h.b16 %v750
  %v1400 = vunpack.c.l.b16 %v751
  %v1401 = vunpack.c.h.b16 %v751
  %v1402 = vunpack.c.l.b16 %v752
  %v1403 = vunpack.c.h.b16 %v752
  %v1404 = vunpack.c.l.b16 %v753
  %v1405 = vunpack.c.h.b16 %v753
  %v1406 = vunpack.c.l.b16 %v754
  %v1407 = vunpack.c.h.b16 %v754
  %v1408 = vunpack.c.l.b16 %v755
  %v1409 = vunpack.c.h.b16 %v755
  %v1410 = vunpack.c.l.b16 %v756
  %v1411 = vunpack.c.h.b16 %v756
  %v1412 = vunpack.c.l.b16 %v757
  %v1413 = vunpack.c.h.b16 %v757
  %v1414 = vunpack.c.l.b16 %v758
  %v1415 = vunpack.c.h.b16 %v758
  %v1416 = vunpack.c.l.b16 %v759
  %v1417 = vunpack.c.h.b16 %v759
  %v1418 = vunpack.c.l.b16 %v760
  %v1419 = vunpack.c.h.b16 %v760
  %v1420 = vunpack.c.l.b16 %v761
  %v1421 = vunpack.c.h.b16 %v761
  %v1422 = vunpack.c.l.b16 %v762
  %v1423 = vunpack.c.h.b16 %v762
  %v1424 = vunpack.c.l.b16 %v763
  %v1425 = vunpack.c.h.b16 %v763
  %v1426 = vunpack.c.l.b16 %v764
  %v1427 = vunpack.c.h.b16 %v764
  %v1428 = vunpack.c.l.b16 %v765
  %v1429 = vunpack.c.h.b16 %v765
  %v1430 = vunpack.c.l.b16 %v766
  %v1431 = vunpack.c.h.b16 %v766
  %v1432 = vunpack.c.l.b16 %v767
  %v1433 = vunpack.c.h.b16 %v767
  %v1434 = vunpack.c.l.b16 %v768
  %v1435 = vunpack.c.h.b16 %v768
  %v1436 = vunpack.c.l.b16 %v769
  %v1437 = vunpack.c.h.b16 %v769
  %v1438 = vunpack.c.l.b16 %v770
  %v1439 = vunpack.c.h.b16 %v770
  %v1440 = vunpack.c.l.b16 %v771
  %v1441 = vunpack.c.h.b16 %v771
  %v1442 = vunpack.c.l.b16 %v772
  %v1443 = vunpack.c.h.b16 %v772
  %v1444 = vunpack.c.l.b16 %v773
  %v1445 = vunpack.c.h.b16 %v773
  %v1446 = vunpack.c.l.b16 %v774
  %v1447 = vunpack.c.h.b16 %v774
  %v1448 = vunpack.c.l.b16 %v775
  %v1449 = vunpack.c.h.b16 %v775
  %v1450 = vunpack.c.l.b16 %v776
  %v1451 = vunpack.c.h.b16 %v776
  %v1452 = vunpack.c.l.b16 %v777
  %v1453 = vunpack.c.h.b16 %v777
  %v1454 = vunpack.c.l.b16 %v778
  %v1455 = vunpack.c.h.b16 %v778
  %v1456 = vunpack.c.l.b16 %v779
  %v1457 = vunpack.c.h.b16 %v779
  %v1458 = vunpack.c.l.b16 %v780
  %v1459 = vunpack.c.h.b16 %v780
  %v1460 = vunpack.c.l.b16 %v781
  %v1461 = vunpack.c.h.b16 %v781
  %v1462 = vunpack.c.l.b16 %v782
  %v1463 = vunpack.c.h.b16 %v782
  %v1464 = vunpack.c.l.b16 %v783
  %v1465 = vunpack.c.h.b16 %v783
  %v1466 = vunpack.c.l.b16 %v784
  %v1467 = vunpack.c.h.b16 %v784
  %v1468 = vunpack.c.l.b16 %v785
  %v1469 = vunpack.c.h.b16 %v785
  %v1470 = vunpack.c.l.b16 %v786
  %v1471 = vunpack.c.h.b16 %v786
  %v1472 = vunpack.c.l.b16 %v787
  %v1473 = vunpack.c.h.b16 %v787
  %v1474 = vunpack.c.l.b16 %v788
  %v1475 = vunpack.c.h.b16 %v788
  %v1476 = vunpack.c.l.b16 %v789
  %v1477 = vunpack.c.h.b16 %v789
  %v1478 = vunpack.c.l.b16 %v790
  %v1479 = vunpack.c.h.b16 %v790
  %v1480 = vunpack.c.l.b16 %v791
  %v1481 = vunpack.c.h.b16 %v791
  %v1482 = vunpack.c.l.b16 %v792
  %v1483 = vunpack.c.h.b16 %v792
  %v1484 = vunpack.c.l.b16 %v793
  %v1485 = vunpack.c.h.b16 %v793
  %v1486 = vunpack.c.l.b16 %v794
  %v1487 = vunpack.c.h.b16 %v794
  %v1488 = vunpack.c.l.b16 %v795
  %v1489 = vunpack.c.h.b16 %v795
  %v1490 = vunpack.c.l.b16 %v796
  %v1491 = vunpack.c.h.b16 %v796
  %v1492 = vunpack.c.l.b16 %v797
  %v1493 = vunpack.c.h.b16 %v797
  %v1494 = vunpack.c.l.b16 %v798
  %v1495 = vunpack.c.h.b16 %v798
  %v1496 = vunpack.c.l.b16 %v799
  %v1497 = vunpack.c.h.b16 %v799
  %v1498 = vunpack.c.l.b16 %v800
  %v1499 = vunpack.c.h.b16 %v800
  %v1500 = vunpack.c.l.b16 %v801
  %v1501 = vunpack.c.h.b16 %v801
  %v1502 = vunpack.c.l.b16 %v802
  %v1503 = vunpack.c.h.b16 %v802
  %v1504 = vunpack.c.l.b16 %v803
  %v1505 = vunpack.c.h.b16 %v803
  %v1506 = vunpack.c.l.b16 %v804
  %v1507 = vunpack.c.h.b16 %v804
  %v1508 = vunpack.c.l.b16 %v805
  %v1509 = vunpack.c.h.b16 %v805
  %v1510 = vunpack.c.l.b16 %v806
  %v1511 = vunpack.c.h.b16 %v806
  %v1512 = vunpack.c.l.b16 %v807
  %v1513 = vunpack.c.h.b16 %v807
  %v1514 = vunpack.c.l.b16 %v808
  %v1515 = vunpack.c.h.b16 %v808
  %v1516 = vunpack.c.l.b16 %v809
  %v1517 = vunpack.c.h.b16 %v809
  %v1518 = vunpack.c.l.b16 %v810
  %v1519 = vunpack.c.h.b16 %v810
  %v1520 = vunpack.c.l.b16 %v811
  %v1521 = vunpack.c.h.b16 %v811
  %v1522 = vunpack.c.l.b16 %v812
  %v1523 = vunpack.c.h.b16 %v812
  %v1524 = vunpack.c.l.b16 %v813
  %v1525 = vunpack.c.h.b16 %v813
  %v1526 = vunpack.c.l.b16 %v814
  %v1527 = vunpack.c.h.b16 %v814
  %v1528 = vunpack.c.l.b16 %v815
  %v1529 = vunpack.c.h.b16 %v815
  %v1530 = vunpack.c.l.b16 %v816
  %v1531 = vunpack.c.h.b16 %v816
  %v1532 = vunpack.c.l.b16 %v817
  %v1533 = vunpack.c.h.b16 %v817
  %v1534 = vunpack.c.l.b16 %v818
  %v1535 = vunpack.c.h.b16 %v818
  %v1536 = vunpack.c.l.b16 %v819
  %v1537 = vunpack.c.h.b16 %v819
  %v1538 = vunpack.c.l.b16 %v820
  %v1539 = vunpack.c.h.b16 %v820
  %v1540 = vunpack.c.l.b16 %v821
  %v1541 = vunpack.c.h.b16 %v821
  %v1542 = vunpack.c.l.b16 %v822
  %v1543 = vunpack.c.h.b16 %v822
  %v1544 = vunpack.c.l.b16 %v823
  %v1545 = vunpack.c.h.b16 %v823
  %v1546 = vunpack.c.l.b16 %v824
  %v1547 = vunpack.c.h.b16 %v824
  %v1548 = vunpack.c.l.b16 %v825
  %v1549 = vunpack.c.h.b16 %v825
  %v1550 = vunpack.c.l.b16 %v826
  %v1551 = vunpack.c.h.b16 %v826
  %v1552 = vunpack.c.l.b16 %v827
  %v1553 = vunpack.c.h.b16 %v827
  %v1554 = vunpack.c.l.b16 %v828
  %v1555 = vunpack.c.h.b16 %v828
  %v1556 = vunpack.c.l.b16 %v829
  %v1557 = vunpack.c.h.b16 %v829
  %v1558 = vunpack.c.l.b16 %v830
  %v1559 = vunpack.c.h.b16 %v830
  %v1560 = vunpack.c.l.b16 %v831
  %v1561 = vunpack.c.h.b16 %v831
  %v1562 = vunpack.c.l.b16 %v832
  %v1563 = vunpack.c.h.b16 %v832
  %v1564 = vunpack.c.l.b16 %v833
  %v1565 = vunpack.c.h.b16 %v833
  %v1566 = vunpack.c.l.b16 %v834
  %v1567 = vunpack.c.h.b16 %v834
  %v1568 = vunpack.c.l.b16 %v835
  %v1569 = vunpack.c.h.b16 %v835
  %v1570 = vunpack.c.l.b16 %v836
  %v1571 = vunpack.c.h.b16 %v836
  %v1572 = vunpack.c.l.b16 %v837
  %v1573 = vunpack.c.h.b16 %v837
  %v1574 = vunpack.c.l.b16 %v838
  %v1575 = vunpack.c.h.b16 %v838
  %v1576 = vunpack.c.l.b16 %v839
  %v1577 = vunpack.c.h.b16 %v839
  %v1578 = vunpack.c.l.b16 %v840
  %v1579 = vunpack.c.h.b16 %v840
  %v1580 = vunpack.c.l.b16 %v841
  %v1581 = vunpack.c.h.b16 %v841
  %v1582 = vunpack.c.l.b16 %v842
  %v1583 = vunpack.c.h.b16 %v842
  %v1584 = vunpack.c.l.b16 %v843
  %v1585 = vunpack.c.h.b16 %v843
  %v1586 = vunpack.c.l.b16 %v844
  %v1587 = vunpack.c.h.b16 %v844
  %v1588 = vunpack.c.l.b16 %v845
  %v1589 = vunpack.c.h.b16 %v845
  %v1590 = vunpack.c.l.b16 %v846
  %v1591 = vunpack.c.h.b16 %v846
  %v1592 = vunpack.c.l.b16 %v847
  %v1593 = vunpack.c.h.b16 %v847
  %v1594 = vunpack.c.l.b16 %v848
  %v1595 = vunpack.c.h.b16 %v848
  %v1596 = vunpack.c.l.b16 %v849
  %v1597 = vunpack.c.h.b16 %v849
  %v1598 = vunpack.c.l.b16 %v850
  %v1599 = vunpack.c.h.b16 %v850
  %v1600 = vunpack.c.l.b16 %v851
  %v1601 = vunpack.c.h.b16 %v851
  %v1602 = vunpack.c.l.b16 %v852
  %v1603 = vunpack.c.h.b16 %v852
  %v1604 = vunpack.c.l.b16 %v853
  %v1605 = vunpack.c.h.b16 %v853
  %v1606 = vunpack.c.l.b16 %v854
  %v1607 = vunpack.c.h.b16 %v854
  %v1608 = vunpack.c.l.b16 %v855
  %v1609 = vunpack.c.h.b16 %v855
  %v1610 = vunpack.c.l.b16 %v856
  %v1611 = vunpack.c.h.b16 %v856
  %v1612 = vunpack.c.l.b16 %v857
  %v1613 = vunpack.c.h.b16 %v857
  %v1614 = vunpack.c.l.b16 %v858
  %v1615 = vunpack.c.h.b16 %v858
  %v1616 = vunpack.c.l.b16 %v859
  %v1617 = vunpack.c.h.b16 %v859
  %v1618 = vunpack.c.l.b16 %v860
  %v1619 = vunpack.c.h.b16 %v860
  %v1620 = vunpack.c.l.b16 %v861
  %v1621 = vunpack.c.h.b16 %v861
  %v1622 = vunpack.c.l.b16 %v862
  %v1623 = vunpack.c.h.b16 %v862
  %v1624 = vunpack.c.l.b16 %v863
  %v1625 = vunpack.c.h.b16 %v863
  %v1626 = vunpack.c.l.b16 %v864
  %v1627 = vunpack.c.h.b16 %v864
  %v1628 = vunpack.c.l.b16 %v865
  %v1629 = vunpack.c.h.b16 %v865
  %v1630 = vunpack.c.l.b16 %v866
  %v1631 = vunpack.c.h.b16 %v866
  %v1632 = vunpack.c.l.b16 %v867
  %v1633 = vunpack.c.h.b16 %v867
  %v1634 = vunpack.c.l.b16 %v868
  %v1635 = vunpack.c.h.b16 %v868
  %v1636 = vunpack.c.l.b16 %v869
  %v1637 = vunpack.c.h.b16 %v869
  %v1638 = vunpack.c.l.b16 %v870
  %v1639 = vunpack.c.h.b16 %v870
  %v1640 = vunpack.c.l.b16 %v871
  %v1641 = vunpack.c.h.b16 %v871
  %v1642 = vunpack.c.l.b16 %v872
  %v1643 = vunpack.c.h.b16 %v872
  %v1644 = vunpack.c.l.b16 %v873
  %v1645 = vunpack.c.h.b16 %v873
  %v1646 = vunpack.c.l.b16 %v874
  %v1647 = vunpack.c.h.b16 %v874
  %v1648 = vunpack.c.l.b16 %v875
  %v1649 = vunpack.c.h.b16 %v875
  %v1650 = vunpack.c.l.b16 %v876
  %v1651 = vunpack.c.h.b16 %v876
  %v1652 = vunpack.c.l.b16 %v877
  %v1653 = vunpack.c.h.b16 %v877
  %v1654 = vunpack.c.l.b16 %v878
  %v1655 = vunpack.c.h.b16 %v878
  %v1656 = vunpack.c.l.b16 %v879
  %v1657 = vunpack.c.h.b16 %v879
  %v1658 = vunpack.c.l.b16 %v880
  %v1659 = vunpack.c.h.b16 %v880
  %v1660 = vunpack.c.l.b16 %v881
  %v1661 = vunpack.c.h.b16 %v881
  %v1662 = vunpack.c.l.b16 %v882
  %v1663 = vunpack.c.h.b16 %v882
  %v1664 = vunpack.c.l.b16 %v883
  %v1665 = vunpack.c.h.b16 %v883
  %v1666 = vunpack.c.l.b16 %v884
  %v1667 = vunpack.c.h.b16 %v884
  %v1668 = vunpack.c.l.b16 %v885
  %v1669 = vunpack.c.h.b16 %v885
  %v1670 = vunpack.c.l.b16 %v886
  %v1671 = vunpack.c.h.b16 %v886
  %v1672 = vunpack.c.l.b16 %v887
  %v1673 = vunpack.c.h.b16 %v887
  %v1674 = vunpack.c.l.b16 %v888
  %v1675 = vunpack.c.h.b16 %v888
  %v1676 = vunpack.c.l.b16 %v889
  %v1677 = vunpack.c.h.b16 %v889
  %v1678 = vunpack.c.l.b16 %v890
  %v1679 = vunpack.c.h.b16 %v890
  %v1680 = vunpack.c.l.b16 %v891
  %v1681 = vunpack.c.h.b16 %v891
  %v1682 = vpack.c.b16 %v1174, %v1170
  %v1683 = vpack.c.b16 %v1175, %v1171
  %v1684 = vpack.c.b16 %v1176, %v1172
  %v1685 = vpack.c.b16 %v1177, %v1173
  %v1686 = vpack.c.b16 %v1182, %v1178
  %v1687 = vpack.c.b16 %v1183, %v1179
  %v1688 = vpack.c.b16 %v1184, %v1180
  %v1689 = vpack.c.b16 %v1185, %v1181
  %v1690 = vpack.c.b16 %v1190, %v1186
  %v1691 = vpack.c.b16 %v1191, %v1187
  %v1692 = vpack.c.b16 %v1192, %v1188
  %v1693 = vpack.c.b16 %v1193, %v1189
  %v1694 = vpack.c.b16 %v1198, %v1194
  %v1695 = vpack.c.b16 %v1199, %v1195
  %v1696 = vpack.c.b16 %v1200, %v1196
  %v1697 = vpack.c.b16 %v1201, %v1197
  %v1698 = vpack.c.b16 %v1206, %v1202
  %v1699 = vpack.c.b16 %v1207, %v1203
  %v1700 = vpack.c.b16 %v1208, %v1204
  %v1701 = vpack.c.b16 %v1209, %v1205
  %v1702 = vpack.c.b16 %v1214, %v1210
  %v1703 = vpack.c.b16 %v1215, %v1211
  %v1704 = vpack.c.b16 %v1216, %v1212
  %v1705 = vpack.c.b16 %v1217, %v1213
  %v1706 = vpack.c.b16 %v1222, %v1218
  %v1707 = vpack.c.b16 %v1223, %v1219
  %v1708 = vpack.c.b16 %v1224, %v1220
  %v1709 = vpack.c.b16 %v1225, %v1221
  %v1710 = vpack.c.b16 %v1230, %v1226
  %v1711 = vpack.c.b16 %v1231, %v1227
  %v1712 = vpack.c.b16 %v1232, %v1228
  %v1713 = vpack.c.b16 %v1233, %v1229
  %v1714 = vpack.c.b16 %v1238, %v1234
  %v1715 = vpack.c.b16 %v1239, %v1235
  %v1716 = vpack.c.b16 %v1240, %v1236
  %v1717 = vpack.c.b16 %v1241, %v1237
  %v1718 = vpack.c.b16 %v1246, %v1242
  %v1719 = vpack.c.b16 %v1247, %v1243
  %v1720 = vpack.c.b16 %v1248, %v1244
  %v1721 = vpack.c.b16 %v1249, %v1245
  %v1722 = vpack.c.b16 %v1254, %v1250
  %v1723 = vpack.c.b16 %v1255, %v1251
  %v1724 = vpack.c.b16 %v1256, %v1252
  %v1725 = vpack.c.b16 %v1257, %v1253
  %v1726 = vpack.c.b16 %v1262, %v1258
  %v1727 = vpack.c.b16 %v1263, %v1259
  %v1728 = vpack.c.b16 %v1264, %v1260
  %v1729 = vpack.c.b16 %v1265, %v1261
  %v1730 = vpack.c.b16 %v1270, %v1266
  %v1731 = vpack.c.b16 %v1271, %v1267
  %v1732 = vpack.c.b16 %v1272, %v1268
  %v1733 = vpack.c.b16 %v1273, %v1269
  %v1734 = vpack.c.b16 %v1278, %v1274
  %v1735 = vpack.c.b16 %v1279, %v1275
  %v1736 = vpack.c.b16 %v1280, %v1276
  %v1737 = vpack.c.b16 %v1281, %v1277
  %v1738 = vpack.c.b16 %v1286, %v1282
  %v1739 = vpack.c.b16 %v1287, %v1283
  %v1740 = vpack.c.b16 %v1288, %v1284
  %v1741 = vpack.c.b16 %v1289, %v1285
  %v1742 = vpack.c.b16 %v1294, %v1290
  %v1743 = vpack.c.b16 %v1295, %v1291
  %v1744 = vpack.c.b16 %v1296, %v1292
  %v1745 = vpack.c.b16 %v1297, %v1293
  %v1746 = vpack.c.b16 %v1302, %v1298
  %v1747 = vpack.c.b16 %v1303, %v1299
  %v1748 = vpack.c.b16 %v1304, %v1300
  %v1749 = vpack.c.b16 %v1305, %v1301
  %v1750 = vpack.c.b16 %v1310, %v1306
  %v1751 = vpack.c.b16 %v1311, %v1307
  %v1752 = vpack.c.b16 %v1312, %v1308
  %v1753 = vpack.c.b16 %v1313, %v1309
  %v1754 = vpack.c.b16 %v1318, %v1314
  %v1755 = vpack.c.b16 %v1319, %v1315
  %v1756 = vpack.c.b16 %v1320, %v1316
  %v1757 = vpack.c.b16 %v1321, %v1317
  %v1758 = vpack.c.b16 %v1326, %v1322
  %v1759 = vpack.c.b16 %v1327, %v1323
  %v1760 = vpack.c.b16 %v1328, %v1324
  %v1761 = vpack.c.b16 %v1329, %v1325
  %v1762 = vpack.c.b16 %v1334, %v1330
  %v1763 = vpack.c.b16 %v1335, %v1331
  %v1764 = vpack.c.b16 %v1336, %v1332
  %v1765 = vpack.c.b16 %v1337, %v1333
  %v1766 = vpack.c.b16 %v1342, %v1338
  %v1767 = vpack.c.b16 %v1343, %v1339
  %v1768 = vpack.c.b16 %v1344, %v1340
  %v1769 = vpack.c.b16 %v1345, %v1341
  %v1770 = vpack.c.b16 %v1350, %v1346
  %v1771 = vpack.c.b16 %v1351, %v1347
  %v1772 = vpack.c.b16 %v1352, %v1348
  %v1773 = vpack.c.b16 %v1353, %v1349
  %v1774 = vpack.c.b16 %v1358, %v1354
  %v1775 = vpack.c.b16 %v1359, %v1355
  %v1776 = vpack.c.b16 %v1360, %v1356
  %v1777 = vpack.c.b16 %v1361, %v1357
  %v1778 = vpack.c.b16 %v1366, %v1362
  %v1779 = vpack.c.b16 %v1367, %v1363
  %v1780 = vpack.c.b16 %v1368, %v1364
  %v1781 = vpack.c.b16 %v1369, %v1365
  %v1782 = vpack.c.b16 %v1374, %v1370
  %v1783 = vpack.c.b16 %v1375, %v1371
  %v1784 = vpack.c.b16 %v1376, %v1372
  %v1785 = vpack.c.b16 %v1377, %v1373
  %v1786 = vpack.c.b16 %v1382, %v1378
  %v1787 = vpack.c.b16 %v1383, %v1379
  %v1788 = vpack.c.b16 %v1384, %v1380
  %v1789 = vpack.c.b16 %v1385, %v1381
  %v1790 = vpack.c.b16 %v1390, %v1386
  %v1791 = vpack.c.b16 %v1391, %v1387
  %v1792 = vpack.c.b16 %v1392, %v1388
  %v1793 = vpack.c.b16 %v1393, %v1389
  %v1794 = vpack.c.b16 %v1398, %v1394
  %v1795 = vpack.c.b16 %v1399, %v1395
  %v1796 = vpack.c.b16 %v1400, %v1396
  %v1797 = vpack.c.b16 %v1401, %v1397
  %v1798 = vpack.c.b16 %v1406, %v1402
  %v1799 = vpack.c.b16 %v1407, %v1403
  %v1800 = vpack.c.b16 %v1408, %v1404
  %v1801 = vpack.c.b16 %v1409, %v1405
  %v1802 = vpack.c.b16 %v1414, %v1410
  %v1803 = vpack.c.b16 %v1415, %v1411
  %v1804 = vpack.c.b16 %v1416, %v1412
  %v1805 = vpack.c.b16 %v1417, %v1413
  %v1806 = vpack.c.b16 %v1422, %v1418
  %v1807 = vpack.c.b16 %v1423, %v1419
  %v1808 = vpack.c.b16 %v1424, %v1420
  %v1809 = vpack.c.b16 %v1425, %v1421
  %v1810 = vpack.c.b16 %v1430, %v1426
  %v1811 = vpack.c.b16 %v1431, %v1427
  %v1812 = vpack.c.b16 %v1432, %v1428
  %v1813 = vpack.c.b16 %v1433, %v1429
  %v1814 = vpack.c.b16 %v1438, %v1434
  %v1815 = vpack.c.b16 %v1439, %v1435
  %v1816 = vpack.c.b16 %v1440, %v1436
  %v1817 = vpack.c.b16 %v1441, %v1437
  %v1818 = vpack.c.b16 %v1446, %v1442
  %v1819 = vpack.c.b16 %v1447, %v1443
  %v1820 = vpack.c.b16 %v1448, %v1444
  %v1821 = vpack.c.b16 %v1449, %v1445
  %v1822 = vpack.c.b16 %v1454, %v1450
  %v1823 = vpack.c.b16 %v1455, %v1451
  %v1824 = vpack.c.b16 %v1456, %v1452
  %v1825 = vpack.c.b16 %v1457, %v1453
  %v1826 = vpack.c.b16 %v1462, %v1458
  %v1827 = vpack.c.b16 %v1463, %v1459
  %v1828 = vpack.c.b16 %v1464, %v1460
  %v1829 = vpack.c.b16 %v1465, %v1461
  %v1830 = vpack.c.b16 %v1470, %v1466
  %v1831 = vpack.c.b16 %v1471, %v1467
  %v1832 = vpack.c.b16 %v1472, %v1468
  %v1833 = vpack.c.b16 %v1473, %v1469
  %v1834 = vpack.c.b16 %v1478, %v1474
  %v1835 = vpack.c.b16 %v1479, %v1475
  %v1836 = vpack.c.b16 %v1480, %v1476
  %v1837 = vpack.c.b16 %v1481, %v1477
  %v1838 = vpack.c.b16 %v1486, %v1482
  %v1839 = vpack.c.b16 %v1487, %v1483
  %v1840 = vpack.c.b16 %v1488, %v1484
  %v1841 = vpack.c.b16 %v1489, %v1485
  %v1842 = vpack.c.b16 %v1494, %v1490
  %v1843 = vpack.c.b16 %v1495, %v1491
  %v1844 = vpack.c.b16 %v1496, %v1492
  %v1845 = vpack.c.b16 %v1497, %v1493
  %v1846 = vpack.c.b16 %v1502, %v1498
  %v1847 = vpack.c.b16 %v1503, %v1499
  %v1848 = vpack.c.b16 %v1504, %v1500
  %v1849 = vpack.c.b16 %v1505, %v1501
  %v1850 = vpack.c.b16 %v1510, %v1506
  %v1851 = vpack.c.b16 %v1511, %v1507
  %v1852 = vpack.c.b16 %v1512, %v1508
  %v1853 = vpack.c.b16 %v1513, %v1509
  %v1854 = vpack.c.b16 %v1518, %v1514
  %v1855 = vpack.c.b16 %v1519, %v1515
  %v1856 = vpack.c.b16 %v1520, %v1516
  %v1857 = vpack.c.b16 %v1521, %v1517
  %v1858 = vpack.c.b16 %v1526, %v1522
  %v1859 = vpack.c.b16 %v1527, %v1523
  %v1860 = vpack.c.b16 %v1528, %v1524
  %v1861 = vpack.c.b16 %v1529, %v1525
  %v1862 = vpack.c.b16 %v1534, %v1530
  %v1863 = vpack.c.b16 %v1535, %v1531
  %v1864 = vpack.c.b16 %v1536, %v1532
  %v1865 = vpack.c.b16 %v1537, %v1533
  %v1866 = vpack.c.b16 %v1542, %v1538
  %v1867 = vpack.c.b16 %v1543, %v1539
  %v1868 = vpack.c.b16 %v1544, %v1540
  %v1869 = vpack.c.b16 %v1545, %v1541
  %v1870 = vpack.c.b16 %v1550, %v1546
  %v1871 = vpack.c.b16 %v1551, %v1547
  %v1872 = vpack.c.b16 %v1552, %v1548
  %v1873 = vpack.c.b16 %v1553, %v1549
  %v1874 = vpack.c.b16 %v1558, %v1554
  %v1875 = vpack.c.b16 %v1559, %v1555
  %v1876 = vpack.c.b16 %v1560, %v1556
  %v1877 = vpack.c.b16 %v1561, %v1557
  %v1878 = vpack.c.b16 %v1566, %v1562
  %v1879 = vpack.c.b16 %v1567, %v1563
  %v1880 = vpack.c.b16 %v1568, %v1564
  %v1881 = vpack.c.b16 %v1569, %v1565
  %v1882 = vpack.c.b16 %v1574, %v1570
  %v1883 = vpack.c.b16 %v1575, %v1571
  %v1884 = vpack.c.b16 %v1576, %v1572
  %v1885 = vpack.c.b16 %v1577, %v1573
  %v1886 = vpack.c.b16 %v1582, %v1578
  %v1887 = vpack.c.b16 %v1583, %v1579
  %v1888 = vpack.c.b16 %v1584, %v1580
  %v1889 = vpack.c.b16 %v1585, %v1581
  %v1890 = vpack.c.b16 %v1590, %v1586
  %v1891 = vpack.c.b16 %v1591, %v1587
  %v1892 = vpack.c.b16 %v1592, %v1588
  %v1893 = vpack.c.b16 %v1593, %v1589
  %v1894 = vpack.c.b16 %v1598, %v1594
  %v1895 = vpack.c.b16 %v1599, %v1595
  %v1896 = vpack.c.b16 %v1600, %v1596
  %v1897 = vpack.c.b16 %v1601, %v1597
  %v1898 = vpack.c.b16 %v1606, %v1602
  %v1899 = vpack.c.b16 %v1607, %v1603
  %v1900 = vpack.c.b16 %v1608, %v1604
  %v1901 = vpack.c.b16 %v1609, %v1605
  %v1902 = vpack.c.b16 %v1614, %v1610
  %v1903 = vpack.c.b16 %v1615, %v1611
  %v1904 = vpack.c.b16 %v1616, %v1612
  %v1905 = vpack.c.b16 %v1617, %v1613
  %v1906 = vpack.c.b16 %v1622, %v1618
  %v1907 = vpack.c.b16 %v1623, %v1619
  %v1908 = vpack.c.b16 %v1624, %v1620
  %v1909 = vpack.c.b16 %v1625, %v1621
  %v1910 = vpack.c.b16 %v1630, %v1626
  %v1911 = vpack.c.b16 %v1631, %v1627
  %v1912 = vpack.c.b16 %v1632, %v1628
  %v1913 = vpack.c.b16 %v1633, %v1629
  %v1914 = vpack.c.b16 %v1638, %v1634
  %v1915 = vpack.c.b16 %v1639, %v1635
  %v1916 = vpack.c.b16 %v1640, %v1636
  %v1917 = vpack.c.b16 %v1641, %v1637
  %v1918 = vpack.c.b16 %v1646, %v1642
  %v1919 = vpack.c.b16 %v1647, %v1643
  %v1920 = vpack.c.b16 %v1648, %v1644
  %v1921 = vpack.c.b16 %v1649, %v1645
  %v1922 = vpack.c.b16 %v1654, %v1650
  %v1923 = vpack.c.b16 %v1655, %v1651
  %v1924 = vpack.c.b16 %v1656, %v1652
  %v1925 = vpack.c.b16 %v1657, %v1653
  %v1926 = vpack.c.b16 %v1662, %v1658
  %v1927 = vpack.c.b16 %v1663, %v1659
  %v1928 = vpack.c.b16 %v1664, %v1660
  %v1929 = vpack.c.b16 %v1665, %v1661
  %v1930 = vpack.c.b16 %v1670, %v1666
  %v1931 = vpack.c.b16 %v1671, %v1667
  %v1932 = vpack.c.b16 %v1672, %v1668
  %v1933 = vpack.c.b16 %v1673, %v1669
  %v1934 = vpack.c.b16 %v1678, %v1674
  %v1935 = vpack.c.b16 %v1679, %v1675
  %v1936 = vpack.c.b16 %v1680, %v1676
  %v1937 = vpack.c.b16 %v1681, %v1677
  %2194 = vmatprep.subr.bf16.mxu0 %v1683
  %2195 = vmatpush1.bf16.msra.mxu0 %v1682
  %2196 = vmatprep.subr.bf16.mxu0 %v1687
  %2197 = vmatpush1.bf16.msra.mxu0 %v1686
  %2198 = vmatprep.subr.bf16.mxu0 %v1691
  %2199 = vmatpush1.bf16.msra.mxu0 %v1690
  %2200 = vmatprep.subr.bf16.mxu0 %v1695
  %2201 = vmatpush1.bf16.msra.mxu0 %v1694
  %2202 = vmatprep.subr.bf16.mxu0 %v1699
  %2203 = vmatpush1.bf16.msra.mxu0 %v1698
  %2204 = vmatprep.subr.bf16.mxu0 %v1703
  %2205 = vmatpush1.bf16.msra.mxu0 %v1702
  %2206 = vmatprep.subr.bf16.mxu0 %v1707
  %2207 = vmatpush1.bf16.msra.mxu0 %v1706
  %2208 = vmatprep.subr.bf16.mxu0 %v1711
  %2209 = vmatpush1.bf16.msra.mxu0 %v1710
  %2210 = vmatprep.subr.bf16.mxu0 %v1715
  %2211 = vmatpush1.bf16.msra.mxu0 %v1714
  %2212 = vmatprep.subr.bf16.mxu0 %v1719
  %2213 = vmatpush1.bf16.msra.mxu0 %v1718
  %2214 = vmatprep.subr.bf16.mxu0 %v1723
  %2215 = vmatpush1.bf16.msra.mxu0 %v1722
  %2216 = vmatprep.subr.bf16.mxu0 %v1727
  %2217 = vmatpush1.bf16.msra.mxu0 %v1726
  %2218 = vmatprep.subr.bf16.mxu0 %v1731
  %2219 = vmatpush1.bf16.msra.mxu0 %v1730
  %2220 = vmatprep.subr.bf16.mxu0 %v1735
  %2221 = vmatpush1.bf16.msra.mxu0 %v1734
  %2222 = vmatprep.subr.bf16.mxu0 %v1739
  %2223 = vmatpush1.bf16.msra.mxu0 %v1738
  %2224 = vmatprep.subr.bf16.mxu0 %v1743
  %2225 = vmatpush1.bf16.msra.mxu0 %v1742
  %2226 = vmatprep.mubr.bf16.mxu0 %v629
  %2227 = vmatmul.mubr.bf16.gmra.mrb[0].mxu0 %v628
  %v2228 = vpop.f32.mrb[0].mxu0
  %v2229 = vadd.f32 %v897, %v2228
  %v2230 = vpop.f32.mrb[0].mxu0
  %v2231 = vadd.f32 %v901, %v2230
  %v2232 = vpop.f32.mrb[0].mxu0
  %v2233 = vpop.f32.mrb[0].mxu0
  %2234 = vdwg.mxu0
  %2235 = vmatprep.subr.bf16.mxu0 %v1747
  %2236 = vmatpush1.bf16.msra.mxu0 %v1746
  %2237 = vmatprep.subr.bf16.mxu0 %v1751
  %2238 = vmatpush1.bf16.msra.mxu0 %v1750
  %2239 = vmatprep.subr.bf16.mxu0 %v1755
  %2240 = vmatpush1.bf16.msra.mxu0 %v1754
  %2241 = vmatprep.subr.bf16.mxu0 %v1759
  %2242 = vmatpush1.bf16.msra.mxu0 %v1758
  %2243 = vmatprep.subr.bf16.mxu0 %v1763
  %2244 = vmatpush1.bf16.msra.mxu0 %v1762
  %2245 = vmatprep.subr.bf16.mxu0 %v1767
  %2246 = vmatpush1.bf16.msra.mxu0 %v1766
  %2247 = vmatprep.subr.bf16.mxu0 %v1771
  %2248 = vmatpush1.bf16.msra.mxu0 %v1770
  %2249 = vmatprep.subr.bf16.mxu0 %v1775
  %2250 = vmatpush1.bf16.msra.mxu0 %v1774
  %2251 = vmatprep.subr.bf16.mxu0 %v1779
  %2252 = vmatpush1.bf16.msra.mxu0 %v1778
  %2253 = vmatprep.subr.bf16.mxu0 %v1783
  %2254 = vmatpush1.bf16.msra.mxu0 %v1782
  %2255 = vmatprep.subr.bf16.mxu0 %v1787
  %2256 = vmatpush1.bf16.msra.mxu0 %v1786
  %2257 = vmatprep.subr.bf16.mxu0 %v1791
  %2258 = vmatpush1.bf16.msra.mxu0 %v1790
  %2259 = vmatprep.subr.bf16.mxu0 %v1795
  %2260 = vmatpush1.bf16.msra.mxu0 %v1794
  %2261 = vmatprep.subr.bf16.mxu0 %v1799
  %2262 = vmatpush1.bf16.msra.mxu0 %v1798
  %2263 = vmatprep.subr.bf16.mxu0 %v1803
  %2264 = vmatpush1.bf16.msra.mxu0 %v1802
  %2265 = vmatprep.subr.bf16.mxu0 %v1807
  %2266 = vmatpush1.bf16.msra.mxu0 %v1806
  %2267 = vmatprep.mubr.bf16.mxu0 %v631
  %2268 = vmatmul.mubr.bf16.gmra.mrb[0].mxu0 %v630
  %v2269 = vpop.f32.mrb[0].mxu0
  %v2270 = vadd.f32 %v2229, %v2269
  %v2271 = vpop.f32.mrb[0].mxu0
  %v2272 = vadd.f32 %v2231, %v2271
  %v2273 = vpop.f32.mrb[0].mxu0
  %v2274 = vpop.f32.mrb[0].mxu0
  %2275 = vdwg.mxu0
  %2276 = vmatprep.subr.bf16.mxu0 %v1811
  %2277 = vmatpush1.bf16.msra.mxu0 %v1810
  %2278 = vmatprep.subr.bf16.mxu0 %v1815
  %2279 = vmatpush1.bf16.msra.mxu0 %v1814
  %2280 = vmatprep.subr.bf16.mxu0 %v1819
  %2281 = vmatpush1.bf16.msra.mxu0 %v1818
  %2282 = vmatprep.subr.bf16.mxu0 %v1823
  %2283 = vmatpush1.bf16.msra.mxu0 %v1822
  %2284 = vmatprep.subr.bf16.mxu0 %v1827
  %2285 = vmatpush1.bf16.msra.mxu0 %v1826
  %2286 = vmatprep.subr.bf16.mxu0 %v1831
  %2287 = vmatpush1.bf16.msra.mxu0 %v1830
  %2288 = vmatprep.subr.bf16.mxu0 %v1835
  %2289 = vmatpush1.bf16.msra.mxu0 %v1834
  %2290 = vmatprep.subr.bf16.mxu0 %v1839
  %2291 = vmatpush1.bf16.msra.mxu0 %v1838
  %2292 = vmatprep.subr.bf16.mxu0 %v1843
  %2293 = vmatpush1.bf16.msra.mxu0 %v1842
  %2294 = vmatprep.subr.bf16.mxu0 %v1847
  %2295 = vmatpush1.bf16.msra.mxu0 %v1846
  %2296 = vmatprep.subr.bf16.mxu0 %v1851
  %2297 = vmatpush1.bf16.msra.mxu0 %v1850
  %2298 = vmatprep.subr.bf16.mxu0 %v1855
  %2299 = vmatpush1.bf16.msra.mxu0 %v1854
  %2300 = vmatprep.subr.bf16.mxu0 %v1859
  %2301 = vmatpush1.bf16.msra.mxu0 %v1858
  %2302 = vmatprep.subr.bf16.mxu0 %v1863
  %2303 = vmatpush1.bf16.msra.mxu0 %v1862
  %2304 = vmatprep.subr.bf16.mxu0 %v1867
  %2305 = vmatpush1.bf16.msra.mxu0 %v1866
  %2306 = vmatprep.subr.bf16.mxu0 %v1871
  %2307 = vmatpush1.bf16.msra.mxu0 %v1870
  %2308 = vmatprep.mubr.bf16.mxu0 %v633
  %2309 = vmatmul.mubr.bf16.gmra.mrb[0].mxu0 %v632
  %v2310 = vpop.f32.mrb[0].mxu0
  %v2311 = vadd.f32 %v2270, %v2310
  %v2312 = vpop.f32.mrb[0].mxu0
  %v2313 = vadd.f32 %v2272, %v2312
  %v2314 = vpop.f32.mrb[0].mxu0
  %v2315 = vpop.f32.mrb[0].mxu0
  %2316 = vdwg.mxu0
  %2317 = vmatprep.subr.bf16.mxu0 %v1875
  %2318 = vmatpush1.bf16.msra.mxu0 %v1874
  %2319 = vmatprep.subr.bf16.mxu0 %v1879
  %2320 = vmatpush1.bf16.msra.mxu0 %v1878
  %2321 = vmatprep.subr.bf16.mxu0 %v1883
  %2322 = vmatpush1.bf16.msra.mxu0 %v1882
  %2323 = vmatprep.subr.bf16.mxu0 %v1887
  %2324 = vmatpush1.bf16.msra.mxu0 %v1886
  %2325 = vmatprep.subr.bf16.mxu0 %v1891
  %2326 = vmatpush1.bf16.msra.mxu0 %v1890
  %2327 = vmatprep.subr.bf16.mxu0 %v1895
  %2328 = vmatpush1.bf16.msra.mxu0 %v1894
  %2329 = vmatprep.subr.bf16.mxu0 %v1899
  %2330 = vmatpush1.bf16.msra.mxu0 %v1898
  %2331 = vmatprep.subr.bf16.mxu0 %v1903
  %2332 = vmatpush1.bf16.msra.mxu0 %v1902
  %2333 = vmatprep.subr.bf16.mxu0 %v1907
  %2334 = vmatpush1.bf16.msra.mxu0 %v1906
  %2335 = vmatprep.subr.bf16.mxu0 %v1911
  %2336 = vmatpush1.bf16.msra.mxu0 %v1910
  %2337 = vmatprep.subr.bf16.mxu0 %v1915
  %2338 = vmatpush1.bf16.msra.mxu0 %v1914
  %2339 = vmatprep.subr.bf16.mxu0 %v1919
  %2340 = vmatpush1.bf16.msra.mxu0 %v1918
  %2341 = vmatprep.subr.bf16.mxu0 %v1923
  %2342 = vmatpush1.bf16.msra.mxu0 %v1922
  %2343 = vmatprep.subr.bf16.mxu0 %v1927
  %2344 = vmatpush1.bf16.msra.mxu0 %v1926
  %2345 = vmatprep.subr.bf16.mxu0 %v1931
  %2346 = vmatpush1.bf16.msra.mxu0 %v1930
  %2347 = vmatprep.subr.bf16.mxu0 %v1935
  %2348 = vmatpush1.bf16.msra.mxu0 %v1934
  %2349 = vmatprep.mubr.bf16.mxu0 %v635
  %2350 = vmatmul.mubr.bf16.gmra.mrb[0].mxu0 %v634
  %v2351 = vpop.f32.mrb[0].mxu0
  %v2352 = vadd.f32 %v2311, %v2351
  %v2353 = vpop.f32.mrb[0].mxu0
  %v2354 = vadd.f32 %v2313, %v2353
  %v2355 = vpop.f32.mrb[0].mxu0
  %v2356 = vpop.f32.mrb[0].mxu0
  %2357 = vdwg.mxu0
  %2358 = vmatprep.subr.bf16.mxu0 %v1685
  %2359 = vmatpush1.bf16.msra.mxu0 %v1684
  %2360 = vmatprep.subr.bf16.mxu0 %v1689
  %2361 = vmatpush1.bf16.msra.mxu0 %v1688
  %2362 = vmatprep.subr.bf16.mxu0 %v1693
  %2363 = vmatpush1.bf16.msra.mxu0 %v1692
  %2364 = vmatprep.subr.bf16.mxu0 %v1697
  %2365 = vmatpush1.bf16.msra.mxu0 %v1696
  %2366 = vmatprep.subr.bf16.mxu0 %v1701
  %2367 = vmatpush1.bf16.msra.mxu0 %v1700
  %2368 = vmatprep.subr.bf16.mxu0 %v1705
  %2369 = vmatpush1.bf16.msra.mxu0 %v1704
  %2370 = vmatprep.subr.bf16.mxu0 %v1709
  %2371 = vmatpush1.bf16.msra.mxu0 %v1708
  %2372 = vmatprep.subr.bf16.mxu0 %v1713
  %2373 = vmatpush1.bf16.msra.mxu0 %v1712
  %2374 = vmatprep.subr.bf16.mxu0 %v1717
  %2375 = vmatpush1.bf16.msra.mxu0 %v1716
  %2376 = vmatprep.subr.bf16.mxu0 %v1721
  %2377 = vmatpush1.bf16.msra.mxu0 %v1720
  %2378 = vmatprep.subr.bf16.mxu0 %v1725
  %2379 = vmatpush1.bf16.msra.mxu0 %v1724
  %2380 = vmatprep.subr.bf16.mxu0 %v1729
  %2381 = vmatpush1.bf16.msra.mxu0 %v1728
  %2382 = vmatprep.subr.bf16.mxu0 %v1733
  %2383 = vmatpush1.bf16.msra.mxu0 %v1732
  %2384 = vmatprep.subr.bf16.mxu0 %v1737
  %2385 = vmatpush1.bf16.msra.mxu0 %v1736
  %2386 = vmatprep.subr.bf16.mxu0 %v1741
  %2387 = vmatpush1.bf16.msra.mxu0 %v1740
  %2388 = vmatprep.subr.bf16.mxu0 %v1745
  %2389 = vmatpush1.bf16.msra.mxu0 %v1744
  %2390 = vmatprep.mubr.bf16.mxu0 %v629
  %2391 = vmatmul.mubr.bf16.gmra.mrb[0].mxu0 %v628
  %v2392 = vpop.f32.mrb[0].mxu0
  %v2393 = vadd.f32 %v905, %v2392
  %v2394 = vpop.f32.mrb[0].mxu0
  %v2395 = vadd.f32 %v909, %v2394
  %v2396 = vpop.f32.mrb[0].mxu0
  %v2397 = vpop.f32.mrb[0].mxu0
  %2398 = vdwg.mxu0
  %2399 = vmatprep.subr.bf16.mxu0 %v1749
  %2400 = vmatpush1.bf16.msra.mxu0 %v1748
  %2401 = vmatprep.subr.bf16.mxu0 %v1753
  %2402 = vmatpush1.bf16.msra.mxu0 %v1752
  %2403 = vmatprep.subr.bf16.mxu0 %v1757
  %2404 = vmatpush1.bf16.msra.mxu0 %v1756
  %2405 = vmatprep.subr.bf16.mxu0 %v1761
  %2406 = vmatpush1.bf16.msra.mxu0 %v1760
  %2407 = vmatprep.subr.bf16.mxu0 %v1765
  %2408 = vmatpush1.bf16.msra.mxu0 %v1764
  %2409 = vmatprep.subr.bf16.mxu0 %v1769
  %2410 = vmatpush1.bf16.msra.mxu0 %v1768
  %2411 = vmatprep.subr.bf16.mxu0 %v1773
  %2412 = vmatpush1.bf16.msra.mxu0 %v1772
  %2413 = vmatprep.subr.bf16.mxu0 %v1777
  %2414 = vmatpush1.bf16.msra.mxu0 %v1776
  %2415 = vmatprep.subr.bf16.mxu0 %v1781
  %2416 = vmatpush1.bf16.msra.mxu0 %v1780
  %2417 = vmatprep.subr.bf16.mxu0 %v1785
  %2418 = vmatpush1.bf16.msra.mxu0 %v1784
  %2419 = vmatprep.subr.bf16.mxu0 %v1789
  %2420 = vmatpush1.bf16.msra.mxu0 %v1788
  %2421 = vmatprep.subr.bf16.mxu0 %v1793
  %2422 = vmatpush1.bf16.msra.mxu0 %v1792
  %2423 = vmatprep.subr.bf16.mxu0 %v1797
  %2424 = vmatpush1.bf16.msra.mxu0 %v1796
  %2425 = vmatprep.subr.bf16.mxu0 %v1801
  %2426 = vmatpush1.bf16.msra.mxu0 %v1800
  %2427 = vmatprep.subr.bf16.mxu0 %v1805
  %2428 = vmatpush1.bf16.msra.mxu0 %v1804
  %2429 = vmatprep.subr.bf16.mxu0 %v1809
  %2430 = vmatpush1.bf16.msra.mxu0 %v1808
  %2431 = vmatprep.mubr.bf16.mxu0 %v631
  %2432 = vmatmul.mubr.bf16.gmra.mrb[0].mxu0 %v630
  %v2433 = vpop.f32.mrb[0].mxu0
  %v2434 = vadd.f32 %v2393, %v2433
  %v2435 = vpop.f32.mrb[0].mxu0
  %v2436 = vadd.f32 %v2395, %v2435
  %v2437 = vpop.f32.mrb[0].mxu0
  %v2438 = vpop.f32.mrb[0].mxu0
  %2439 = vdwg.mxu0
  %2440 = vmatprep.subr.bf16.mxu0 %v1813
  %2441 = vmatpush1.bf16.msra.mxu0 %v1812
  %2442 = vmatprep.subr.bf16.mxu0 %v1817
  %2443 = vmatpush1.bf16.msra.mxu0 %v1816
  %2444 = vmatprep.subr.bf16.mxu0 %v1821
  %2445 = vmatpush1.bf16.msra.mxu0 %v1820
  %2446 = vmatprep.subr.bf16.mxu0 %v1825
  %2447 = vmatpush1.bf16.msra.mxu0 %v1824
  %2448 = vmatprep.subr.bf16.mxu0 %v1829
  %2449 = vmatpush1.bf16.msra.mxu0 %v1828
  %2450 = vmatprep.subr.bf16.mxu0 %v1833
  %2451 = vmatpush1.bf16.msra.mxu0 %v1832
  %2452 = vmatprep.subr.bf16.mxu0 %v1837
  %2453 = vmatpush1.bf16.msra.mxu0 %v1836
  %2454 = vmatprep.subr.bf16.mxu0 %v1841
  %2455 = vmatpush1.bf16.msra.mxu0 %v1840
  %2456 = vmatprep.subr.bf16.mxu0 %v1845
  %2457 = vmatpush1.bf16.msra.mxu0 %v1844
  %2458 = vmatprep.subr.bf16.mxu0 %v1849
  %2459 = vmatpush1.bf16.msra.mxu0 %v1848
  %2460 = vmatprep.subr.bf16.mxu0 %v1853
  %2461 = vmatpush1.bf16.msra.mxu0 %v1852
  %2462 = vmatprep.subr.bf16.mxu0 %v1857
  %2463 = vmatpush1.bf16.msra.mxu0 %v1856
  %2464 = vmatprep.subr.bf16.mxu0 %v1861
  %2465 = vmatpush1.bf16.msra.mxu0 %v1860
  %2466 = vmatprep.subr.bf16.mxu0 %v1865
  %2467 = vmatpush1.bf16.msra.mxu0 %v1864
  %2468 = vmatprep.subr.bf16.mxu0 %v1869
  %2469 = vmatpush1.bf16.msra.mxu0 %v1868
  %2470 = vmatprep.subr.bf16.mxu0 %v1873
  %2471 = vmatpush1.bf16.msra.mxu0 %v1872
  %2472 = vmatprep.mubr.bf16.mxu0 %v633
  %2473 = vmatmul.mubr.bf16.gmra.mrb[0].mxu0 %v632
  %v2474 = vpop.f32.mrb[0].mxu0
  %v2475 = vadd.f32 %v2434, %v2474
  %v2476 = vpop.f32.mrb[0].mxu0
  %v2477 = vadd.f32 %v2436, %v2476
  %v2478 = vpop.f32.mrb[0].mxu0
  %v2479 = vpop.f32.mrb[0].mxu0
  %2480 = vdwg.mxu0
  %2481 = vmatprep.subr.bf16.mxu0 %v1877
  %2482 = vmatpush1.bf16.msra.mxu0 %v1876
  %2483 = vmatprep.subr.bf16.mxu0 %v1881
  %2484 = vmatpush1.bf16.msra.mxu0 %v1880
  %2485 = vmatprep.subr.bf16.mxu0 %v1885
  %2486 = vmatpush1.bf16.msra.mxu0 %v1884
  %2487 = vmatprep.subr.bf16.mxu0 %v1889
  %2488 = vmatpush1.bf16.msra.mxu0 %v1888
  %2489 = vmatprep.subr.bf16.mxu0 %v1893
  %2490 = vmatpush1.bf16.msra.mxu0 %v1892
  %2491 = vmatprep.subr.bf16.mxu0 %v1897
  %2492 = vmatpush1.bf16.msra.mxu0 %v1896
  %2493 = vmatprep.subr.bf16.mxu0 %v1901
  %2494 = vmatpush1.bf16.msra.mxu0 %v1900
  %2495 = vmatprep.subr.bf16.mxu0 %v1905
  %2496 = vmatpush1.bf16.msra.mxu0 %v1904
  %2497 = vmatprep.subr.bf16.mxu0 %v1909
  %2498 = vmatpush1.bf16.msra.mxu0 %v1908
  %2499 = vmatprep.subr.bf16.mxu0 %v1913
  %2500 = vmatpush1.bf16.msra.mxu0 %v1912
  %2501 = vmatprep.subr.bf16.mxu0 %v1917
  %2502 = vmatpush1.bf16.msra.mxu0 %v1916
  %2503 = vmatprep.subr.bf16.mxu0 %v1921
  %2504 = vmatpush1.bf16.msra.mxu0 %v1920
  %2505 = vmatprep.subr.bf16.mxu0 %v1925
  %2506 = vmatpush1.bf16.msra.mxu0 %v1924
  %2507 = vmatprep.subr.bf16.mxu0 %v1929
  %2508 = vmatpush1.bf16.msra.mxu0 %v1928
  %2509 = vmatprep.subr.bf16.mxu0 %v1933
  %2510 = vmatpush1.bf16.msra.mxu0 %v1932
  %2511 = vmatprep.subr.bf16.mxu0 %v1937
  %2512 = vmatpush1.bf16.msra.mxu0 %v1936
  %2513 = vmatprep.mubr.bf16.mxu0 %v635
  %2514 = vmatmul.mubr.bf16.gmra.mrb[0].mxu0 %v634
  %v2515 = vpop.f32.mrb[0].mxu0
  %v2516 = vadd.f32 %v2475, %v2515
  %v2517 = vpop.f32.mrb[0].mxu0
  %v2518 = vadd.f32 %v2477, %v2517
  %v2519 = vpop.f32.mrb[0].mxu0
  %v2520 = vpop.f32.mrb[0].mxu0
  %2521 = vdwg.mxu0
  %v2522 = vmax.f32 %v2352, 0.0
  %v2523 = vmax.f32 %v2354, 0.0
  %v2524 = vmax.f32 %v2516, 0.0
  %v2525 = vmax.f32 %v2518, 0.0
  %v2526 = vld [vmem:[%s5] sm:$0xf]
  %v2528 = vlaneseq
  %v2529 = vshrl.u32 %v2528, 7
  %v2530 = vsub.s32 0, %v2529
  %v2531 = vrot.slane %v2526, %v2530
  %v2532 = vlaneseq
  %v2533 = vshrl.u32 %v2532, 7
  %v2534 = vsub.s32 1, %v2533
  %v2535 = vrot.slane %v2526, %v2534
  %v2536 = vlaneseq
  %v2537 = vshrl.u32 %v2536, 7
  %v2538 = vsub.s32 2, %v2537
  %v2539 = vrot.slane %v2526, %v2538
  %v2540 = vlaneseq
  %v2541 = vshrl.u32 %v2540, 7
  %v2542 = vsub.s32 3, %v2541
  %v2543 = vrot.slane %v2526, %v2542
  %v2548 = vmul.f32 %v2522, %v2531
  %v2549 = vmul.f32 %v2523, %v2535
  %v2550 = vmul.f32 %v2524, %v2539
  %v2551 = vmul.f32 %v2525, %v2543
  %v2552 = vadd.f32 %v2548, %v2549
  %v2553 = vadd.f32 %v2552, %v2550
  %v2554 = vadd.f32 %v2553, %v2551
  %2555 = vadd.xlane.f32.xlu0 %v2554
  %v2556 = vpop.xlane.xlu0 %2555
  %v2557 = vld [vmem:[#allocation2] sm:$0x1]
  %v2559 = vlaneseq
  %v2560 = vshrl.u32 %v2559, 7
  %v2561 = vsub.s32 0, %v2560
  %v2562 = vrot.slane %v2557, %v2561
  %v2564 = vadd.f32 %v2556, %v2562
  %vm2565 = vcmask 7168
  %2566 = vst.msk [vmem:[%s7] sm:$0xff] %vm2565, %v2564
  // Predicated region
  $region30: #{net_forward.1} parent=0 // pred_check
    _
  $region31: #{net_forward.1} parent=0 // pred_check_branch
    %2568 = sbr.rel (0) target = $region33
  $region32: #{net_forward.1} parent=0 // pred_region
    _
  $region33: #{net_forward.1} parent=0 // pred_fallthru
    _
  // Predicated region
  $region34: #{net_forward.1} parent=0 // pred_check
    _
  $region35: #{net_forward.1} parent=0 // pred_check_branch
    %2570 = sbr.rel (0) target = $region37
  $region36: #{net_forward.1} parent=0 // pred_region
    _
  $region37: #{net_forward.1} parent=0 // pred_fallthru
    _

</llo_original>
